<compile_context>
chip_gen: v7x
topology: tpu7x:2x2x1
jax: 0.10.0
libtpu: 0.0.40
codegen_flags: <defaults>
</compile_context>

<pallas_src>
import math
import functools

import jax
import jax.numpy as jnp
from jax import lax
from jax.experimental import pallas as pl
from jax.experimental.pallas import tpu as pltpu


# ---------------------------------------------------------------------------
# Helpers
# ---------------------------------------------------------------------------
def _pick_tile(n, candidates=(256, 128)):
    """Largest lane/sublane-friendly tile dividing n, else the full extent."""
    for t in candidates:
        if n % t == 0:
            return t
    return n  # small / irregular extent: a single full-size tile (always legal)


def _vmem_limit_bytes():
    """Generation-aware scoped-VMEM limit (v7x has 64 MiB physical vs 128 MiB)."""
    try:
        kind = jax.devices()[0].device_kind.lower()
    except Exception:
        kind = ""
    if "v7" in kind or "7x" in kind:
        return 48 * 1024 * 1024
    return 100 * 1024 * 1024


def _vmem_resident_spec():
    """Whole-array, grid-invariant VMEM residence for weights / biases."""
    return pl.BlockSpec(memory_space=pltpu.MemorySpace.VMEM)


# ---------------------------------------------------------------------------
# Kernel 1: fused Q/K/V projection  (row-tiled GEMM, weights VMEM-resident)
# ---------------------------------------------------------------------------
def _qkv_proj_kernel(*refs, d_model, fused):
    if fused:
        # Self-attention: one (rows, d_model) x (d_model, 3*d_model) GEMM.
        x_ref, w_ref, b_ref, qo_ref, ko_ref, vo_ref = refs
        y = jnp.dot(x_ref[...], w_ref[...],
                    preferred_element_type=jnp.float32) + b_ref[...]
        qo_ref[...] = y[:, 0 * d_model:1 * d_model].astype(qo_ref.dtype)
        ko_ref[...] = y[:, 1 * d_model:2 * d_model].astype(ko_ref.dtype)
        vo_ref[...] = y[:, 2 * d_model:3 * d_model].astype(vo_ref.dtype)
    else:
        # Distinct q/k/v inputs: three GEMMs against static lane slices of [Wq|Wk|Wv].
        xq_ref, xk_ref, xv_ref, w_ref, b_ref, qo_ref, ko_ref, vo_ref = refs
        for i, (x_ref, o_ref) in enumerate(
                ((xq_ref, qo_ref), (xk_ref, ko_ref), (xv_ref, vo_ref))):
            sl = slice(i * d_model, (i + 1) * d_model)
            y = jnp.dot(x_ref[...], w_ref[:, sl],
                        preferred_element_type=jnp.float32) + b_ref[:, sl]
            o_ref[...] = y.astype(o_ref.dtype)


def _project_qkv(q, k, v, prep, vmem_limit):
    d_model = prep["d_model"]
    cdt = prep["compute_dtype"]
    bs, seq, _ = q.shape
    rows = bs * seq
    br = _pick_tile(rows, (512, 256, 128))
    fused = (q is k) and (k is v)          # self-attention -> single fused GEMM

    row_spec = pl.BlockSpec((br, d_model), lambda r: (r, 0))
    if fused:
        xs = [q.reshape(rows, d_model).astype(cdt)]
        in_specs = [row_spec, _vmem_resident_spec(), _vmem_resident_spec()]
    else:
        xs = [x.reshape(rows, d_model).astype(cdt) for x in (q, k, v)]
        in_specs = [row_spec, row_spec, row_spec,
                    _vmem_resident_spec(), _vmem_resident_spec()]

    out_sds = jax.ShapeDtypeStruct((rows, d_model), cdt)
    qp, kp, vp = pl.pallas_call(
        functools.partial(_qkv_proj_kernel, d_model=d_model, fused=fused),
        grid=(rows // br,),
        in_specs=in_specs,
        out_specs=(row_spec, row_spec, row_spec),
        out_shape=(out_sds, out_sds, out_sds),
        compiler_params=pltpu.CompilerParams(
            dimension_semantics=("parallel",),
            vmem_limit_bytes=vmem_limit),
    )(*xs, prep["w_qkv"], prep["b_qkv"])
    shape3 = (bs, seq, d_model)
    return qp.reshape(shape3), kp.reshape(shape3), vp.reshape(shape3)


# ---------------------------------------------------------------------------
# Kernel 2: flash attention (online softmax over kv tiles) + output projection
# ---------------------------------------------------------------------------
def _flash_attn_kernel(q_ref, k_ref, v_ref, wo_ref, bo_ref, *rest,
                       heads, d_k, masked, approx_recip):
    if masked:
        mask_ref, o_ref, acc_sc, m_sc, l_sc = rest
    else:
        mask_ref = m_sc = l_sc = None
        o_ref, acc_sc = rest

    cdt = q_ref.dtype
    kv_i = pl.program_id(2)

    @pl.when(kv_i == 0)
    def _init():
        acc_sc[...] = jnp.zeros(acc_sc.shape, jnp.float32)
        if masked:
            m_sc[...] = jnp.full(m_sc.shape, -jnp.inf, jnp.float32)
            l_sc[...] = jnp.zeros(l_sc.shape, jnp.float32)

    qp = q_ref[0]        # (tq, d_model)  compute dtype
    kp = k_ref[0]        # (tk, d_model)
    vp = v_ref[0]        # (tk, d_model)

    if masked:
        # int8 mask; upcast only for the compare (VPU work, no HBM/VMEM cost).
        neg = mask_ref[0].astype(jnp.int32) == 0            # (tq, tk), all heads

    for h in range(heads):
        hs = slice(h * d_k, (h + 1) * d_k)
        qh = qp[:, hs]
        kh = kp[:, hs]
        vh = vp[:, hs]

        # scores = qh @ kh^T  (1/sqrt(d_k) already folded into Wq / bq)
        s = lax.dot_general(qh, kh,
                            dimension_numbers=(((1,), (1,)), ((), ())),
                            preferred_element_type=jnp.float32)   # (tq, tk) f32

        if masked:
            s = jnp.where(neg, jnp.float32(-1000000000.0), s)
            m_prev = m_sc[:, h:h + 1]                             # (tq, 1)
            m_new = jnp.maximum(m_prev, jnp.max(s, axis=-1, keepdims=True))
            alpha = jnp.exp(m_prev - m_new)                       # (tq, 1)
            p = jnp.exp(s - m_new)                                # (tq, tk) f32
            l_sc[:, h:h + 1] = alpha * l_sc[:, h:h + 1] + jnp.sum(
                p, axis=-1, keepdims=True)
            m_sc[:, h:h + 1] = m_new
            pv = lax.dot_general(p.astype(cdt), vh,
                                 dimension_numbers=(((1,), (0,)), ((), ())),
                                 preferred_element_type=jnp.float32)
            acc_sc[:, hs] = alpha * acc_sc[:, hs] + pv            # head slab at h*d_k
        else:
            # Reference quirk: no softmax when mask is None.  Keep the unbounded raw
            # scores in f32 all the way through the PV matmul.
            pv = lax.dot_general(s, vh.astype(jnp.float32),
                                 dimension_numbers=(((1,), (0,)), ((), ())),
                                 preferred_element_type=jnp.float32)
            acc_sc[:, hs] = acc_sc[:, hs] + pv

    @pl.when(kv_i == pl.num_programs(2) - 1)
    def _finalize():
        if masked:
            if approx_recip:
                inv = pl.reciprocal(l_sc[...], approx=True)       # (tq, heads), EUP
            else:
                inv = 1.0 / l_sc[...]
            for h in range(heads):
                hs = slice(h * d_k, (h + 1) * d_k)
                acc_sc[:, hs] = acc_sc[:, hs] * inv[:, h:h + 1]
            attn = acc_sc[...].astype(cdt)
            w_o = wo_ref[...]
        else:
            attn = acc_sc[...]                     # f32 raw-score path stays f32
            w_o = wo_ref[...].astype(jnp.float32)
        out = jnp.dot(attn, w_o, preferred_element_type=jnp.float32) + bo_ref[...]
        o_ref[0] = out.astype(o_ref.dtype)


# ---------------------------------------------------------------------------
# Host-side one-time weight preparation (hoisted out of the per-call path)
# ---------------------------------------------------------------------------
def prepare_mha_params(params, heads, compute_dtype=jnp.bfloat16):
    d_model = params["wq"].shape[0]
    assert d_model % heads == 0
    d_k = d_model // heads
    scale = 1.0 / math.sqrt(d_k)
    cdt = compute_dtype

    wq_t = (params["wq"].T * scale).astype(cdt)     # fold 1/sqrt(d_k) into Wq
    wk_t = params["wk"].T.astype(cdt)
    wv_t = params["wv"].T.astype(cdt)
    w_qkv = jnp.concatenate([wq_t, wk_t, wv_t], axis=1)            # (d, 3d)
    b_qkv = jnp.concatenate(
        [params["bq"] * scale, params["bk"], params["bv"]]
    ).reshape(1, 3 * d_model).astype(jnp.float32)

    return {
        "w_qkv": w_qkv,
        "b_qkv": b_qkv,
        "wo": params["wo"].T.astype(cdt),
        "bo": params["bo"].reshape(1, d_model).astype(jnp.float32),
        "heads": heads, "d_k": d_k, "d_model": d_model,
        "compute_dtype": cdt,
    }


# ---------------------------------------------------------------------------
# Forward wrapper
# ---------------------------------------------------------------------------
def mha_forward(q, k, v, prepared, mask=None, out_dtype=None, approx_recip=True):
    """MultiHeadAttention.forward: QKV projection + flash attention + out-proj."""
    heads, d_k, d_model = prepared["heads"], prepared["d_k"], prepared["d_model"]
    bs, seq, dm = q.shape
    assert dm == d_model
    if out_dtype is None:
        out_dtype = q.dtype
    vmem_limit = _vmem_limit_bytes()

    # --- kernel 1: Q/K/V projections ---
    qp, kp, vp = _project_qkv(q, k, v, prepared, vmem_limit)

    # --- kernel 2: flash attention + output projection ---
    tq = _pick_tile(seq)
    tk = _pick_tile(seq)
    masked = mask is not None

    q_spec = pl.BlockSpec((1, tq, d_model), lambda b, qi, ki: (b, qi, 0))
    kv_spec = pl.BlockSpec((1, tk, d_model), lambda b, qi, ki: (b, ki, 0))
    o_spec = pl.BlockSpec((1, tq, d_model), lambda b, qi, ki: (b, qi, 0))

    in_specs = [q_spec, kv_spec, kv_spec,
                _vmem_resident_spec(), _vmem_resident_spec()]
    args = [qp, kp, vp, prepared["wo"], prepared["bo"]]
    if masked:
        assert mask.shape == (bs, seq, seq)
        if mask.dtype != jnp.int8:                 # callers should pass int8/bool
            mask = (mask != 0).astype(jnp.int8)
        in_specs.append(pl.BlockSpec((1, tq, tk), lambda b, qi, ki: (b, qi, ki)))
        args.append(mask)

    scratch = [pltpu.VMEM((tq, d_model), jnp.float32)]          # per-head acc slab
    if masked:
        scratch += [pltpu.VMEM((tq, heads), jnp.float32),       # running row max
                    pltpu.VMEM((tq, heads), jnp.float32)]       # running denom

    kernel = functools.partial(_flash_attn_kernel, heads=heads, d_k=d_k,
                               masked=masked, approx_recip=approx_recip)

    return pl.pallas_call(
        kernel,
        grid=(bs, seq // tq, seq // tk),
        in_specs=in_specs,
        out_specs=o_spec,
        out_shape=jax.ShapeDtypeStruct((bs, seq, d_model), out_dtype),
        scratch_shapes=scratch,
        compiler_params=pltpu.CompilerParams(
            dimension_semantics=("parallel", "parallel", "arbitrary"),
            vmem_limit_bytes=vmem_limit),
    )(*args)


# ---------------------------------------------------------------------------
# Pure-JAX reference (for correctness check)
# ---------------------------------------------------------------------------
def ref_mha(q, k, v, params, heads, mask=None):
    bs, seq, d_model = q.shape
    d_k = d_model // heads

    def lin(x, w, b):
        return x @ w.T + b

    def proj(x, w, b):
        return lin(x, w, b).reshape(bs, seq, heads, d_k).transpose(0, 2, 1, 3)

    qh = proj(q, params["wq"], params["bq"])
    kh = proj(k, params["wk"], params["bk"])
    vh = proj(v, params["wv"], params["bv"])
    scores = jnp.einsum("bhqd,bhkd->bhqk", qh, kh) / math.sqrt(d_k)
    if mask is not None:
        scores = jnp.where(mask[:, None] == 0, -1000000000.0, scores)
        scores = jax.nn.softmax(scores, axis=-1)
    attn = jnp.einsum("bhqk,bhkd->bhqd", scores, vh)
    concat = attn.transpose(0, 2, 1, 3).reshape(bs, seq, d_model)
    return lin(concat, params["wo"], params["bo"])


# ---------------------------------------------------------------------------
# Main
# ---------------------------------------------------------------------------
if __name__ == "__main__":
    # Lane-dense d_model (multiple of 128) and multiple q/kv tiles so the flash
    # path (online softmax across kv tiles) is actually exercised.
    bs, seq, d_model, heads = 2, 256, 128, 4      # d_k = 32

    key = jax.random.PRNGKey(0)
    keys = jax.random.split(key, 12)
    bound = 1.0 / math.sqrt(d_model)

    def init_w(k_):
        return jax.random.uniform(k_, (d_model, d_model), jnp.float32, -bound, bound)

    def init_b(k_):
        return jax.random.uniform(k_, (d_model,), jnp.float32, -bound, bound)

    params = {
        "wq": init_w(keys[0]), "bq": init_b(keys[1]),
        "wk": init_w(keys[2]), "bk": init_b(keys[3]),
        "wv": init_w(keys[4]), "bv": init_b(keys[5]),
        "wo": init_w(keys[6]), "bo": init_b(keys[7]),
    }

    q = jax.random.normal(keys[8], (bs, seq, d_model), jnp.float32)
    k = jax.random.normal(keys[9], (bs, seq, d_model), jnp.float32)
    v = jax.random.normal(keys[10], (bs, seq, d_model), jnp.float32)
    mask = (jax.random.uniform(keys[11], (bs, seq, seq)) > 0.2).astype(jnp.float32)

    ref_none = ref_mha(q, k, v, params, heads, mask=None)
    ref_masked = ref_mha(q, k, v, params, heads, mask=mask)
    ref_self = ref_mha(q, q, q, params, heads, mask=mask)

    # --- f32 compute path: tight numerical checks (exact softmax division) ---
    prep32 = prepare_mha_params(params, heads, compute_dtype=jnp.float32)

    out = mha_forward(q, k, v, prep32, mask=None, approx_recip=False)
    jax.block_until_ready(out)
    assert jnp.allclose(out, ref_none, atol=1e-3, rtol=1e-3), "f32 mask=None mismatch"

    out_m = mha_forward(q, k, v, prep32, mask=mask, approx_recip=False)
    jax.block_until_ready(out_m)
    assert jnp.allclose(out_m, ref_masked, atol=1e-3, rtol=1e-3), "f32 masked mismatch"

    out_s = mha_forward(q, q, q, prep32, mask=mask, approx_recip=False)  # fused QKV GEMM
    jax.block_until_ready(out_s)
    assert jnp.allclose(out_s, ref_self, atol=1e-3, rtol=1e-3), "f32 self-attn mismatch"

    # --- bf16 MXU path (perf configuration): relative-error checks ---
    prep16 = prepare_mha_params(params, heads, compute_dtype=jnp.bfloat16)

    def rel_err(a, b):
        return float(jnp.max(jnp.abs(a - b)) / (jnp.max(jnp.abs(b)) + 1e-6))

    out_bf_m = mha_forward(q, k, v, prep16, mask=mask)
    jax.block_until_ready(out_bf_m)
    assert rel_err(out_bf_m, ref_masked) < 5e-2, "bf16 masked mismatch"

    out_bf = mha_forward(q, k, v, prep16, mask=None)
    jax.block_until_ready(out_bf)
    assert rel_err(out_bf, ref_none) < 5e-2, "bf16 mask=None mismatch"

    print("KERNEL_OK")
</pallas_src>

<mosaic_0001>
module attributes {stable_mosaic.version = 11 : i64} {
  func.func @_qkv_proj_kernel(%arg0: i32, %arg1: memref<512x128xf32, #tpu.memory_space<vmem>>, %arg2: memref<512x128xf32, #tpu.memory_space<vmem>>, %arg3: memref<512x128xf32, #tpu.memory_space<vmem>>, %arg4: memref<128x384xf32, #tpu.memory_space<vmem>>, %arg5: memref<1x384xf32, #tpu.memory_space<vmem>>, %arg6: memref<512x128xf32, #tpu.memory_space<vmem>>, %arg7: memref<512x128xf32, #tpu.memory_space<vmem>>, %arg8: memref<512x128xf32, #tpu.memory_space<vmem>>) attributes {dimension_semantics = [#tpu.dimension_semantics<parallel>], iteration_bounds = array<i64: 1>, scalar_prefetch = 0 : i64, scratch_operands = 0 : i64, tpu.core_type = #tpu.core_type<tc>, window_params = [{transform_indices = @transform_0, window_bounds = array<i64: 512, 128>}, {transform_indices = @transform_1, window_bounds = array<i64: 512, 128>}, {transform_indices = @transform_2, window_bounds = array<i64: 512, 128>}, {pipeline_mode = #tpu.pipeline_mode<synchronous>, transform_indices = @transform_3, window_bounds = array<i64: 128, 384>}, {pipeline_mode = #tpu.pipeline_mode<synchronous>, transform_indices = @transform_4, window_bounds = array<i64: 1, 384>}, {transform_indices = @transform_5, window_bounds = array<i64: 512, 128>}, {transform_indices = @transform_6, window_bounds = array<i64: 512, 128>}, {transform_indices = @transform_7, window_bounds = array<i64: 512, 128>}]} {
    %c0 = arith.constant 0 : index
    %c0_0 = arith.constant 0 : index
    %0 = vector.load %arg1[%c0, %c0_0] : memref<512x128xf32, #tpu.memory_space<vmem>>, vector<512x128xf32>
    %c0_1 = arith.constant 0 : index
    %c0_2 = arith.constant 0 : index
    %1 = vector.load %arg4[%c0_1, %c0_2] : memref<128x384xf32, #tpu.memory_space<vmem>>, vector<128x128xf32>
    %cst = arith.constant dense<0.000000e+00> : vector<512x128xf32>
    %2 = tpu.matmul %0, %1, %cst {dimension_numbers = #tpu.dot_dimension_numbers<[1], [0], [0], [1], [0, 0, 1, 1], [], []>} : vector<512x128xf32>, vector<128x128xf32>, vector<512x128xf32> -> vector<512x128xf32>
    %c0_3 = arith.constant 0 : index
    %c0_4 = arith.constant 0 : index
    %3 = vector.load %arg5[%c0_3, %c0_4] : memref<1x384xf32, #tpu.memory_space<vmem>>, vector<1x128xf32>
    %4 = vector.broadcast %3 : vector<1x128xf32> to vector<512x128xf32>
    %5 = arith.addf %2, %4 : vector<512x128xf32>
    %c0_5 = arith.constant 0 : index
    %c0_6 = arith.constant 0 : index
    %6 = vector.load %arg6[%c0_5, %c0_6] : memref<512x128xf32, #tpu.memory_space<vmem>>, vector<512x128xf32>
    tpu.vector_store %arg6[%c0_5, %c0_6], %5 {strides = array<i32>} : memref<512x128xf32, #tpu.memory_space<vmem>>, vector<512x128xf32>,
    %c0_7 = arith.constant 0 : index
    %c0_8 = arith.constant 0 : index
    %7 = vector.load %arg2[%c0_7, %c0_8] : memref<512x128xf32, #tpu.memory_space<vmem>>, vector<512x128xf32>
    %c0_9 = arith.constant 0 : index
    %c128 = arith.constant 128 : index
    %8 = vector.load %arg4[%c0_9, %c128] : memref<128x384xf32, #tpu.memory_space<vmem>>, vector<128x128xf32>
    %cst_10 = arith.constant dense<0.000000e+00> : vector<512x128xf32>
    %9 = tpu.matmul %7, %8, %cst_10 {dimension_numbers = #tpu.dot_dimension_numbers<[1], [0], [0], [1], [0, 0, 1, 1], [], []>} : vector<512x128xf32>, vector<128x128xf32>, vector<512x128xf32> -> vector<512x128xf32>
    %c0_11 = arith.constant 0 : index
    %c128_12 = arith.constant 128 : index
    %10 = vector.load %arg5[%c0_11, %c128_12] : memref<1x384xf32, #tpu.memory_space<vmem>>, vector<1x128xf32>
    %11 = vector.broadcast %10 : vector<1x128xf32> to vector<512x128xf32>
    %12 = arith.addf %9, %11 : vector<512x128xf32>
    %c0_13 = arith.constant 0 : index
    %c0_14 = arith.constant 0 : index
    %13 = vector.load %arg7[%c0_13, %c0_14] : memref<512x128xf32, #tpu.memory_space<vmem>>, vector<512x128xf32>
    tpu.vector_store %arg7[%c0_13, %c0_14], %12 {strides = array<i32>} : memref<512x128xf32, #tpu.memory_space<vmem>>, vector<512x128xf32>,
    %c0_15 = arith.constant 0 : index
    %c0_16 = arith.constant 0 : index
    %14 = vector.load %arg3[%c0_15, %c0_16] : memref<512x128xf32, #tpu.memory_space<vmem>>, vector<512x128xf32>
    %c0_17 = arith.constant 0 : index
    %c256 = arith.constant 256 : index
    %15 = vector.load %arg4[%c0_17, %c256] : memref<128x384xf32, #tpu.memory_space<vmem>>, vector<128x128xf32>
    %cst_18 = arith.constant dense<0.000000e+00> : vector<512x128xf32>
    %16 = tpu.matmul %14, %15, %cst_18 {dimension_numbers = #tpu.dot_dimension_numbers<[1], [0], [0], [1], [0, 0, 1, 1], [], []>} : vector<512x128xf32>, vector<128x128xf32>, vector<512x128xf32> -> vector<512x128xf32>
    %c0_19 = arith.constant 0 : index
    %c256_20 = arith.constant 256 : index
    %17 = vector.load %arg5[%c0_19, %c256_20] : memref<1x384xf32, #tpu.memory_space<vmem>>, vector<1x128xf32>
    %18 = vector.broadcast %17 : vector<1x128xf32> to vector<512x128xf32>
    %19 = arith.addf %16, %18 : vector<512x128xf32>
    %c0_21 = arith.constant 0 : index
    %c0_22 = arith.constant 0 : index
    %20 = vector.load %arg8[%c0_21, %c0_22] : memref<512x128xf32, #tpu.memory_space<vmem>>, vector<512x128xf32>
    tpu.vector_store %arg8[%c0_21, %c0_22], %19 {strides = array<i32>} : memref<512x128xf32, #tpu.memory_space<vmem>>, vector<512x128xf32>,
    return
  }
  func.func @transform_0(%arg0: i32) -> (i32, i32) {
    %c0_i32 = arith.constant 0 : i32
    %c0_i32_0 = arith.constant 0 : i32
    return %arg0, %c0_i32 : i32, i32
  }
  func.func @transform_1(%arg0: i32) -> (i32, i32) {
    %c0_i32 = arith.constant 0 : i32
    %c0_i32_0 = arith.constant 0 : i32
    return %arg0, %c0_i32 : i32, i32
  }
  func.func @transform_2(%arg0: i32) -> (i32, i32) {
    %c0_i32 = arith.constant 0 : i32
    %c0_i32_0 = arith.constant 0 : i32
    return %arg0, %c0_i32 : i32, i32
  }
  func.func @transform_3(%arg0: i32) -> (i32, i32) {
    %c0_i32 = arith.constant 0 : i32
    %c0_i32_0 = arith.constant 0 : i32
    %c0_i32_1 = arith.constant 0 : i32
    return %c0_i32, %c0_i32_0 : i32, i32
  }
  func.func @transform_4(%arg0: i32) -> (i32, i32) {
    %c0_i32 = arith.constant 0 : i32
    %c0_i32_0 = arith.constant 0 : i32
    %c0_i32_1 = arith.constant 0 : i32
    return %c0_i32, %c0_i32_0 : i32, i32
  }
  func.func @transform_5(%arg0: i32) -> (i32, i32) {
    %c0_i32 = arith.constant 0 : i32
    %c0_i32_0 = arith.constant 0 : i32
    return %arg0, %c0_i32 : i32, i32
  }
  func.func @transform_6(%arg0: i32) -> (i32, i32) {
    %c0_i32 = arith.constant 0 : i32
    %c0_i32_0 = arith.constant 0 : i32
    return %arg0, %c0_i32 : i32, i32
  }
  func.func @transform_7(%arg0: i32) -> (i32, i32) {
    %c0_i32 = arith.constant 0 : i32
    %c0_i32_0 = arith.constant 0 : i32
    return %arg0, %c0_i32 : i32, i32
  }
}

</mosaic_0001>

<llo_original>
// kernel: tpu_custom_call.1
$region0: #{tpu_custom_call.1}
  #allocation0 [shape = 'u32[]', space=smem, size = 0x4, offset = 0x4, fixed_abs, tag = 'smem constant byte address 0x4 - core index']
  #allocation1 [shape = 'u32[144,128]{1,0:T(1,128)}', space=vmem, size = 0x12000, scoped, tag = 'internal scratch']
  %s0 = inlined_call_operand.hbm [shape: f32[512,128], index: 0, kind: input, shape index: {}]
  %s1 = inlined_call_operand.hbm [shape: f32[512,128], index: 1, kind: input, shape index: {}]
  %s2 = inlined_call_operand.hbm [shape: f32[512,128], index: 2, kind: input, shape index: {}]
  %s3 = inlined_call_operand.hbm [shape: f32[128,384], index: 3, kind: input, shape index: {}]
  %s4 = inlined_call_operand.hbm [shape: f32[1,384], index: 4, kind: input, shape index: {}]
  %s5 = inlined_call_operand.hbm [shape: f32[512,128], index: 5, kind: output, shape index: {0}]
  %s6 = inlined_call_operand.hbm [shape: f32[512,128], index: 6, kind: output, shape index: {1}]
  %s7 = inlined_call_operand.hbm [shape: f32[512,128], index: 7, kind: output, shape index: {2}]
  %8 = xla_tuple %s5, %s6, %s7
  %s9 = sld [smem:[#allocation0]]
  $region66: #{tpu_custom_call.1} parent=0
    _
  %s11 = ssub.s32 1, %s9
  %s12 = scalar_select 0, %s11, %s9
  $region1: #{tpu_custom_call.1} parent=0
    #allocation2 [shape = 'u8[262144]{0}', space=vmem, size = 0x40000, scoped, tag = 'input window, operand 0, single buffered']
    #allocation3 [shape = 's32[1]{0}', space=sflag, size = 0x4, scoped, tag = 'scoped memory for tpu_custom_call.1']
    #allocation4 [shape = 's32[1]{0}', space=sflag, size = 0x4, scoped, tag = 'scoped memory for tpu_custom_call.1']
    #allocation5 [shape = 'u8[262144]{0}', space=vmem, size = 0x40000, scoped, tag = 'input window, operand 1, single buffered']
    #allocation6 [shape = 's32[1]{0}', space=sflag, size = 0x4, scoped, tag = 'scoped memory for tpu_custom_call.1']
    #allocation7 [shape = 'u8[262144]{0}', space=vmem, size = 0x40000, scoped, tag = 'input window, operand 2, single buffered']
    #allocation8 [shape = 'u8[196608]{0}', space=vmem, size = 0x30000, scoped, tag = 'input window, operand 3, single buffered']
    #allocation9 [shape = 's32[1]{0}', space=sflag, size = 0x4, scoped, tag = 'scoped memory for tpu_custom_call.1']
    #allocation10 [shape = 'u8[1536]{0}', space=vmem, size = 0x800, scoped, tag = 'input window, operand 4, single buffered']
    #allocation11 [shape = 'u8[262144]{0}', space=vmem, size = 0x40000, scoped, tag = 'output window, operand 0, single buffered']
    #allocation12 [shape = 'u8[262144]{0}', space=vmem, size = 0x40000, scoped, tag = 'output window, operand 1, single buffered']
    #allocation13 [shape = 's32[1]{0}', space=sflag, size = 0x4, scoped, tag = 'scoped memory for tpu_custom_call.1']
    #allocation14 [shape = 'u8[262144]{0}', space=vmem, size = 0x40000, scoped, tag = 'output window, operand 2, single buffered']
    %13 = vsyncpa [#allocation3], 0
    %14 = vsyncpa [#allocation6], 0
    %15 = vsyncpa [#allocation9], 0
    %16 = vsyncpa [#allocation4], 0
    %17 = vsyncpa [#allocation13], 0
    // Predicated region
    $region2: #{tpu_custom_call.1} parent=1 // pred_check
      _
    $region3: #{tpu_custom_call.1} parent=1 // pred_check_branch
      %19 = sbr.rel (0) target = $region5
    $region4: #{tpu_custom_call.1} parent=1 // pred_region
      %s21 = ssub.s32 8192, 8192
      %22 = vsyncadd [#allocation3], %s21
      %s23 = sshll.u32 [#allocation2], 4
      %s24 = int_to_ptr.vmem [resolvable:$true] %s23
      %29 = dma.hbm_to_vmem [thread:$0]  %s0, 8192, %s24, [#allocation3], 128, 128, 8
    $region5: #{tpu_custom_call.1} parent=1 // pred_fallthru
      _
    // Predicated region
    $region6: #{tpu_custom_call.1} parent=1 // pred_check
      _
    $region7: #{tpu_custom_call.1} parent=1 // pred_check_branch
      %31 = sbr.rel (0) target = $region9
    $region8: #{tpu_custom_call.1} parent=1 // pred_region
      %s33 = ssub.s32 8192, 8192
      %34 = vsyncadd [#allocation6], %s33
      %s35 = sshll.u32 [#allocation5], 4
      %s36 = int_to_ptr.vmem [resolvable:$true] %s35
      %41 = dma.hbm_to_vmem [thread:$0]  %s1, 8192, %s36, [#allocation6], 128, 128, 8
    $region9: #{tpu_custom_call.1} parent=1 // pred_fallthru
      _
    // Predicated region
    $region10: #{tpu_custom_call.1} parent=1 // pred_check
      _
    $region11: #{tpu_custom_call.1} parent=1 // pred_check_branch
      %43 = sbr.rel (0) target = $region13
    $region12: #{tpu_custom_call.1} parent=1 // pred_region
      %s45 = ssub.s32 8192, 8192
      %46 = vsyncadd [#allocation6], %s45
      %s47 = sshll.u32 [#allocation7], 4
      %s48 = int_to_ptr.vmem [resolvable:$true] %s47
      %53 = dma.hbm_to_vmem [thread:$0]  %s2, 8192, %s48, [#allocation6], 128, 128, 8
    $region13: #{tpu_custom_call.1} parent=1 // pred_fallthru
      _
    // Predicated region
    $region14: #{tpu_custom_call.1} parent=1 // pred_check
      _
    $region15: #{tpu_custom_call.1} parent=1 // pred_check_branch
      %55 = sbr.rel (0) target = $region17
    $region16: #{tpu_custom_call.1} parent=1 // pred_region
      %s57 = ssub.s32 6144, 6144
      %58 = vsyncadd [#allocation9], %s57
      %s59 = sshll.u32 [#allocation8], 4
      %s60 = int_to_ptr.vmem [resolvable:$true] %s59
      %65 = dma.hbm_to_vmem [thread:$0]  %s3, 6144, %s60, [#allocation9], 384, 384, 24
    $region17: #{tpu_custom_call.1} parent=1 // pred_fallthru
      _
    // Predicated region
    $region18: #{tpu_custom_call.1} parent=1 // pred_check
      _
    $region19: #{tpu_custom_call.1} parent=1 // pred_check_branch
      %67 = sbr.rel (0) target = $region21
    $region20: #{tpu_custom_call.1} parent=1 // pred_region
      %s69 = ssub.s32 48, 48
      %70 = vsyncadd [#allocation9], %s69
      %s72 = sshll.u32 [#allocation10], 4
      %s73 = int_to_ptr.vmem [resolvable:$true] %s72
      %75 = dma.hbm_to_vmem [thread:$0]  %s4, 48, %s73, [#allocation9]
    $region21: #{tpu_custom_call.1} parent=1 // pred_fallthru
      _
    // Predicated region
    $region22: #{tpu_custom_call.1} parent=1 // pred_check
      _
    $region23: #{tpu_custom_call.1} parent=1 // pred_check_branch
      %77 = sbr.rel (0) target = $region25
    $region24: #{tpu_custom_call.1} parent=1 // pred_region
      %78 = dma.done [#allocation3], 8192
    $region25: #{tpu_custom_call.1} parent=1 // pred_fallthru
      _
    // Predicated region
    $region26: #{tpu_custom_call.1} parent=1 // pred_check
      _
    $region27: #{tpu_custom_call.1} parent=1 // pred_check_branch
      %80 = sbr.rel (0) target = $region29
    $region28: #{tpu_custom_call.1} parent=1 // pred_region
      %81 = dma.done [#allocation6], 8192
    $region29: #{tpu_custom_call.1} parent=1 // pred_fallthru
      _
    // Predicated region
    $region30: #{tpu_custom_call.1} parent=1 // pred_check
      _
    $region31: #{tpu_custom_call.1} parent=1 // pred_check_branch
      %83 = sbr.rel (0) target = $region33
    $region32: #{tpu_custom_call.1} parent=1 // pred_region
      %84 = dma.done [#allocation6], 8192
    $region33: #{tpu_custom_call.1} parent=1 // pred_fallthru
      _
    // Predicated region
    $region34: #{tpu_custom_call.1} parent=1 // pred_check
      _
    $region35: #{tpu_custom_call.1} parent=1 // pred_check_branch
      %86 = sbr.rel (0) target = $region37
    $region36: #{tpu_custom_call.1} parent=1 // pred_region
      %87 = dma.done [#allocation9], 6144
    $region37: #{tpu_custom_call.1} parent=1 // pred_fallthru
      _
    // Predicated region
    $region38: #{tpu_custom_call.1} parent=1 // pred_check
      _
    $region39: #{tpu_custom_call.1} parent=1 // pred_check_branch
      %89 = sbr.rel (0) target = $region41
    $region40: #{tpu_custom_call.1} parent=1 // pred_region
      %90 = dma.done [#allocation9], 48
    $region41: #{tpu_custom_call.1} parent=1 // pred_fallthru
      _
    %v91 = vld [vmem:[#allocation2] sm:$0xff]
    %v92 = vld [vmem:[#allocation2 + $0x8] sm:$0xff]
    %v93 = vld [vmem:[#allocation2 + $0x10] sm:$0xff]
    %v94 = vld [vmem:[#allocation2 + $0x18] sm:$0xff]
    %v95 = vld [vmem:[#allocation2 + $0x20] sm:$0xff]
    %v96 = vld [vmem:[#allocation2 + $0x28] sm:$0xff]
    %v97 = vld [vmem:[#allocation2 + $0x30] sm:$0xff]
    %v98 = vld [vmem:[#allocation2 + $0x38] sm:$0xff]
    %v99 = vld [vmem:[#allocation2 + $0x40] sm:$0xff]
    %v100 = vld [vmem:[#allocation2 + $0x48] sm:$0xff]
    %v101 = vld [vmem:[#allocation2 + $0x50] sm:$0xff]
    %v102 = vld [vmem:[#allocation2 + $0x58] sm:$0xff]
    %v103 = vld [vmem:[#allocation2 + $0x60] sm:$0xff]
    %v104 = vld [vmem:[#allocation2 + $0x68] sm:$0xff]
    %v105 = vld [vmem:[#allocation2 + $0x70] sm:$0xff]
    %v106 = vld [vmem:[#allocation2 + $0x78] sm:$0xff]
    %v107 = vld [vmem:[#allocation2 + $0x80] sm:$0xff]
    %v108 = vld [vmem:[#allocation2 + $0x88] sm:$0xff]
    %v109 = vld [vmem:[#allocation2 + $0x90] sm:$0xff]
    %v110 = vld [vmem:[#allocation2 + $0x98] sm:$0xff]
    %v111 = vld [vmem:[#allocation2 + $0xa0] sm:$0xff]
    %v112 = vld [vmem:[#allocation2 + $0xa8] sm:$0xff]
    %v113 = vld [vmem:[#allocation2 + $0xb0] sm:$0xff]
    %v114 = vld [vmem:[#allocation2 + $0xb8] sm:$0xff]
    %v115 = vld [vmem:[#allocation2 + $0xc0] sm:$0xff]
    %v116 = vld [vmem:[#allocation2 + $0xc8] sm:$0xff]
    %v117 = vld [vmem:[#allocation2 + $0xd0] sm:$0xff]
    %v118 = vld [vmem:[#allocation2 + $0xd8] sm:$0xff]
    %v119 = vld [vmem:[#allocation2 + $0xe0] sm:$0xff]
    %v120 = vld [vmem:[#allocation2 + $0xe8] sm:$0xff]
    %v121 = vld [vmem:[#allocation2 + $0xf0] sm:$0xff]
    %v122 = vld [vmem:[#allocation2 + $0xf8] sm:$0xff]
    %v123 = vld [vmem:[#allocation2 + $0x100] sm:$0xff]
    %v124 = vld [vmem:[#allocation2 + $0x108] sm:$0xff]
    %v125 = vld [vmem:[#allocation2 + $0x110] sm:$0xff]
    %v126 = vld [vmem:[#allocation2 + $0x118] sm:$0xff]
    %v127 = vld [vmem:[#allocation2 + $0x120] sm:$0xff]
    %v128 = vld [vmem:[#allocation2 + $0x128] sm:$0xff]
    %v129 = vld [vmem:[#allocation2 + $0x130] sm:$0xff]
    %v130 = vld [vmem:[#allocation2 + $0x138] sm:$0xff]
    %v131 = vld [vmem:[#allocation2 + $0x140] sm:$0xff]
    %v132 = vld [vmem:[#allocation2 + $0x148] sm:$0xff]
    %v133 = vld [vmem:[#allocation2 + $0x150] sm:$0xff]
    %v134 = vld [vmem:[#allocation2 + $0x158] sm:$0xff]
    %v135 = vld [vmem:[#allocation2 + $0x160] sm:$0xff]
    %v136 = vld [vmem:[#allocation2 + $0x168] sm:$0xff]
    %v137 = vld [vmem:[#allocation2 + $0x170] sm:$0xff]
    %v138 = vld [vmem:[#allocation2 + $0x178] sm:$0xff]
    %v139 = vld [vmem:[#allocation2 + $0x180] sm:$0xff]
    %v140 = vld [vmem:[#allocation2 + $0x188] sm:$0xff]
    %v141 = vld [vmem:[#allocation2 + $0x190] sm:$0xff]
    %v142 = vld [vmem:[#allocation2 + $0x198] sm:$0xff]
    %v143 = vld [vmem:[#allocation2 + $0x1a0] sm:$0xff]
    %v144 = vld [vmem:[#allocation2 + $0x1a8] sm:$0xff]
    %v145 = vld [vmem:[#allocation2 + $0x1b0] sm:$0xff]
    %v146 = vld [vmem:[#allocation2 + $0x1b8] sm:$0xff]
    %v147 = vld [vmem:[#allocation2 + $0x1c0] sm:$0xff]
    %v148 = vld [vmem:[#allocation2 + $0x1c8] sm:$0xff]
    %v149 = vld [vmem:[#allocation2 + $0x1d0] sm:$0xff]
    %v150 = vld [vmem:[#allocation2 + $0x1d8] sm:$0xff]
    %v151 = vld [vmem:[#allocation2 + $0x1e0] sm:$0xff]
    %v152 = vld [vmem:[#allocation2 + $0x1e8] sm:$0xff]
    %v153 = vld [vmem:[#allocation2 + $0x1f0] sm:$0xff]
    %v154 = vld [vmem:[#allocation2 + $0x1f8] sm:$0xff]
    %v155 = vld [vmem:[#allocation8] sm:$0xff]
    %v156 = vld [vmem:[#allocation8 + $0x18] sm:$0xff]
    %v157 = vld [vmem:[#allocation8 + $0x30] sm:$0xff]
    %v158 = vld [vmem:[#allocation8 + $0x48] sm:$0xff]
    %v159 = vld [vmem:[#allocation8 + $0x60] sm:$0xff]
    %v160 = vld [vmem:[#allocation8 + $0x78] sm:$0xff]
    %v161 = vld [vmem:[#allocation8 + $0x90] sm:$0xff]
    %v162 = vld [vmem:[#allocation8 + $0xa8] sm:$0xff]
    %v163 = vld [vmem:[#allocation8 + $0xc0] sm:$0xff]
    %v164 = vld [vmem:[#allocation8 + $0xd8] sm:$0xff]
    %v165 = vld [vmem:[#allocation8 + $0xf0] sm:$0xff]
    %v166 = vld [vmem:[#allocation8 + $0x108] sm:$0xff]
    %v167 = vld [vmem:[#allocation8 + $0x120] sm:$0xff]
    %v168 = vld [vmem:[#allocation8 + $0x138] sm:$0xff]
    %v169 = vld [vmem:[#allocation8 + $0x150] sm:$0xff]
    %v170 = vld [vmem:[#allocation8 + $0x168] sm:$0xff]
    %v171 = vld [vmem:[#allocation10] sm:$0x1]
    %v173 = vlaneseq
    %v174 = vshrl.u32 %v173, 7
    %v175 = vsub.s32 0, %v174
    %v176 = vrot.slane %v171, %v175
    %178 = vmatprep.subr.mxu0 0.0
    %179 = vmatpush1.msra.mxu0 %v155
    %180 = vmatprep.subr.mxu0 0.0
    %181 = vmatpush1.msra.mxu0 %v156
    %182 = vmatprep.subr.mxu0 0.0
    %183 = vmatpush1.msra.mxu0 %v157
    %184 = vmatprep.subr.mxu0 0.0
    %185 = vmatpush1.msra.mxu0 %v158
    %186 = vmatprep.subr.mxu0 0.0
    %187 = vmatpush1.msra.mxu0 %v159
    %188 = vmatprep.subr.mxu0 0.0
    %189 = vmatpush1.msra.mxu0 %v160
    %190 = vmatprep.subr.mxu0 0.0
    %191 = vmatpush1.msra.mxu0 %v161
    %192 = vmatprep.subr.mxu0 0.0
    %193 = vmatpush1.msra.mxu0 %v162
    %194 = vmatprep.subr.mxu0 0.0
    %195 = vmatpush1.msra.mxu0 %v163
    %196 = vmatprep.subr.mxu0 0.0
    %197 = vmatpush1.msra.mxu0 %v164
    %198 = vmatprep.subr.mxu0 0.0
    %199 = vmatpush1.msra.mxu0 %v165
    %200 = vmatprep.subr.mxu0 0.0
    %201 = vmatpush1.msra.mxu0 %v166
    %202 = vmatprep.subr.mxu0 0.0
    %203 = vmatpush1.msra.mxu0 %v167
    %204 = vmatprep.subr.mxu0 0.0
    %205 = vmatpush1.msra.mxu0 %v168
    %206 = vmatprep.subr.mxu0 0.0
    %207 = vmatpush1.msra.mxu0 %v169
    %208 = vmatprep.subr.mxu0 0.0
    %209 = vmatpush1.msra.mxu0 %v170
    %210 = vmatprep.subr.mxu0 0.0
    %211 = vmatpush1.msra.mxu0 0.0
    %212 = vmatprep.subr.mxu0 0.0
    %213 = vmatpush1.msra.mxu0 0.0
    %214 = vmatprep.subr.mxu0 0.0
    %215 = vmatpush1.msra.mxu0 0.0
    %216 = vmatprep.subr.mxu0 0.0
    %217 = vmatpush1.msra.mxu0 0.0
    %218 = vmatprep.subr.mxu0 0.0
    %219 = vmatpush1.msra.mxu0 0.0
    %220 = vmatprep.subr.mxu0 0.0
    %221 = vmatpush1.msra.mxu0 0.0
    %222 = vmatprep.subr.mxu0 0.0
    %223 = vmatpush1.msra.mxu0 0.0
    %224 = vmatprep.subr.mxu0 0.0
    %225 = vmatpush1.msra.mxu0 0.0
    %226 = vmatprep.subr.mxu0 0.0
    %227 = vmatpush1.msra.mxu0 0.0
    %228 = vmatprep.subr.mxu0 0.0
    %229 = vmatpush1.msra.mxu0 0.0
    %230 = vmatprep.subr.mxu0 0.0
    %231 = vmatpush1.msra.mxu0 0.0
    %232 = vmatprep.subr.mxu0 0.0
    %233 = vmatpush1.msra.mxu0 0.0
    %234 = vmatprep.subr.mxu0 0.0
    %235 = vmatpush1.msra.mxu0 0.0
    %236 = vmatprep.subr.mxu0 0.0
    %237 = vmatpush1.msra.mxu0 0.0
    %238 = vmatprep.subr.mxu0 0.0
    %239 = vmatpush1.msra.mxu0 0.0
    %240 = vmatprep.subr.mxu0 0.0
    %241 = vmatpush1.msra.mxu0 0.0
    %242 = vmatprep.mubr.f32.mxu0 0.0
    %243 = vmatmul.mubr.f32.gmra.mrb[0].mxu0 %v91
    %v244 = vpop.f32.mrb[0].mxu0
    %v245 = vadd.f32 %v176, %v244
    %v246 = vpop.f32.mrb[0].mxu0
    %247 = vmatprep.mubr.f32.mxu0 0.0
    %248 = vmatmul.mubr.f32.gmra.mrb[0].mxu0 %v92
    %v249 = vpop.f32.mrb[0].mxu0
    %v250 = vadd.f32 %v176, %v249
    %v251 = vpop.f32.mrb[0].mxu0
    %252 = vmatprep.mubr.f32.mxu0 0.0
    %253 = vmatmul.mubr.f32.gmra.mrb[0].mxu0 %v93
    %v254 = vpop.f32.mrb[0].mxu0
    %v255 = vadd.f32 %v176, %v254
    %v256 = vpop.f32.mrb[0].mxu0
    %257 = vmatprep.mubr.f32.mxu0 0.0
    %258 = vmatmul.mubr.f32.gmra.mrb[0].mxu0 %v94
    %v259 = vpop.f32.mrb[0].mxu0
    %v260 = vadd.f32 %v176, %v259
    %v261 = vpop.f32.mrb[0].mxu0
    %262 = vmatprep.mubr.f32.mxu0 0.0
    %263 = vmatmul.mubr.f32.gmra.mrb[0].mxu0 %v95
    %v264 = vpop.f32.mrb[0].mxu0
    %v265 = vadd.f32 %v176, %v264
    %v266 = vpop.f32.mrb[0].mxu0
    %267 = vmatprep.mubr.f32.mxu0 0.0
    %268 = vmatmul.mubr.f32.gmra.mrb[0].mxu0 %v96
    %v269 = vpop.f32.mrb[0].mxu0
    %v270 = vadd.f32 %v176, %v269
    %v271 = vpop.f32.mrb[0].mxu0
    %272 = vmatprep.mubr.f32.mxu0 0.0
    %273 = vmatmul.mubr.f32.gmra.mrb[0].mxu0 %v97
    %v274 = vpop.f32.mrb[0].mxu0
    %v275 = vadd.f32 %v176, %v274
    %v276 = vpop.f32.mrb[0].mxu0
    %277 = vmatprep.mubr.f32.mxu0 0.0
    %278 = vmatmul.mubr.f32.gmra.mrb[0].mxu0 %v98
    %v279 = vpop.f32.mrb[0].mxu0
    %v280 = vadd.f32 %v176, %v279
    %v281 = vpop.f32.mrb[0].mxu0
    %282 = vmatprep.mubr.f32.mxu0 0.0
    %283 = vmatmul.mubr.f32.gmra.mrb[0].mxu0 %v99
    %v284 = vpop.f32.mrb[0].mxu0
    %v285 = vadd.f32 %v176, %v284
    %v286 = vpop.f32.mrb[0].mxu0
    %287 = vmatprep.mubr.f32.mxu0 0.0
    %288 = vmatmul.mubr.f32.gmra.mrb[0].mxu0 %v100
    %v289 = vpop.f32.mrb[0].mxu0
    %v290 = vadd.f32 %v176, %v289
    %v291 = vpop.f32.mrb[0].mxu0
    %292 = vmatprep.mubr.f32.mxu0 0.0
    %293 = vmatmul.mubr.f32.gmra.mrb[0].mxu0 %v101
    %v294 = vpop.f32.mrb[0].mxu0
    %v295 = vadd.f32 %v176, %v294
    %v296 = vpop.f32.mrb[0].mxu0
    %297 = vmatprep.mubr.f32.mxu0 0.0
    %298 = vmatmul.mubr.f32.gmra.mrb[0].mxu0 %v102
    %v299 = vpop.f32.mrb[0].mxu0
    %v300 = vadd.f32 %v176, %v299
    %v301 = vpop.f32.mrb[0].mxu0
    %302 = vmatprep.mubr.f32.mxu0 0.0
    %303 = vmatmul.mubr.f32.gmra.mrb[0].mxu0 %v103
    %v304 = vpop.f32.mrb[0].mxu0
    %v305 = vadd.f32 %v176, %v304
    %v306 = vpop.f32.mrb[0].mxu0
    %307 = vmatprep.mubr.f32.mxu0 0.0
    %308 = vmatmul.mubr.f32.gmra.mrb[0].mxu0 %v104
    %v309 = vpop.f32.mrb[0].mxu0
    %v310 = vadd.f32 %v176, %v309
    %v311 = vpop.f32.mrb[0].mxu0
    %312 = vmatprep.mubr.f32.mxu0 0.0
    %313 = vmatmul.mubr.f32.gmra.mrb[0].mxu0 %v105
    %v314 = vpop.f32.mrb[0].mxu0
    %v315 = vadd.f32 %v176, %v314
    %v316 = vpop.f32.mrb[0].mxu0
    %317 = vmatprep.mubr.f32.mxu0 0.0
    %318 = vmatmul.mubr.f32.gmra.mrb[0].mxu0 %v106
    %v319 = vpop.f32.mrb[0].mxu0
    %v320 = vadd.f32 %v176, %v319
    %v321 = vpop.f32.mrb[0].mxu0
    %322 = vmatprep.mubr.f32.mxu0 0.0
    %323 = vmatmul.mubr.f32.gmra.mrb[0].mxu0 %v107
    %v324 = vpop.f32.mrb[0].mxu0
    %v325 = vadd.f32 %v176, %v324
    %v326 = vpop.f32.mrb[0].mxu0
    %327 = vmatprep.mubr.f32.mxu0 0.0
    %328 = vmatmul.mubr.f32.gmra.mrb[0].mxu0 %v108
    %v329 = vpop.f32.mrb[0].mxu0
    %v330 = vadd.f32 %v176, %v329
    %v331 = vpop.f32.mrb[0].mxu0
    %332 = vmatprep.mubr.f32.mxu0 0.0
    %333 = vmatmul.mubr.f32.gmra.mrb[0].mxu0 %v109
    %v334 = vpop.f32.mrb[0].mxu0
    %v335 = vadd.f32 %v176, %v334
    %v336 = vpop.f32.mrb[0].mxu0
    %337 = vmatprep.mubr.f32.mxu0 0.0
    %338 = vmatmul.mubr.f32.gmra.mrb[0].mxu0 %v110
    %v339 = vpop.f32.mrb[0].mxu0
    %v340 = vadd.f32 %v176, %v339
    %v341 = vpop.f32.mrb[0].mxu0
    %342 = vmatprep.mubr.f32.mxu0 0.0
    %343 = vmatmul.mubr.f32.gmra.mrb[0].mxu0 %v111
    %v344 = vpop.f32.mrb[0].mxu0
    %v345 = vadd.f32 %v176, %v344
    %v346 = vpop.f32.mrb[0].mxu0
    %347 = vmatprep.mubr.f32.mxu0 0.0
    %348 = vmatmul.mubr.f32.gmra.mrb[0].mxu0 %v112
    %v349 = vpop.f32.mrb[0].mxu0
    %v350 = vadd.f32 %v176, %v349
    %v351 = vpop.f32.mrb[0].mxu0
    %352 = vmatprep.mubr.f32.mxu0 0.0
    %353 = vmatmul.mubr.f32.gmra.mrb[0].mxu0 %v113
    %v354 = vpop.f32.mrb[0].mxu0
    %v355 = vadd.f32 %v176, %v354
    %v356 = vpop.f32.mrb[0].mxu0
    %357 = vmatprep.mubr.f32.mxu0 0.0
    %358 = vmatmul.mubr.f32.gmra.mrb[0].mxu0 %v114
    %v359 = vpop.f32.mrb[0].mxu0
    %v360 = vadd.f32 %v176, %v359
    %v361 = vpop.f32.mrb[0].mxu0
    %362 = vmatprep.mubr.f32.mxu0 0.0
    %363 = vmatmul.mubr.f32.gmra.mrb[0].mxu0 %v115
    %v364 = vpop.f32.mrb[0].mxu0
    %v365 = vadd.f32 %v176, %v364
    %v366 = vpop.f32.mrb[0].mxu0
    %367 = vmatprep.mubr.f32.mxu0 0.0
    %368 = vmatmul.mubr.f32.gmra.mrb[0].mxu0 %v116
    %v369 = vpop.f32.mrb[0].mxu0
    %v370 = vadd.f32 %v176, %v369
    %v371 = vpop.f32.mrb[0].mxu0
    %372 = vmatprep.mubr.f32.mxu0 0.0
    %373 = vmatmul.mubr.f32.gmra.mrb[0].mxu0 %v117
    %v374 = vpop.f32.mrb[0].mxu0
    %v375 = vadd.f32 %v176, %v374
    %v376 = vpop.f32.mrb[0].mxu0
    %377 = vmatprep.mubr.f32.mxu0 0.0
    %378 = vmatmul.mubr.f32.gmra.mrb[0].mxu0 %v118
    %v379 = vpop.f32.mrb[0].mxu0
    %v380 = vadd.f32 %v176, %v379
    %v381 = vpop.f32.mrb[0].mxu0
    %382 = vmatprep.mubr.f32.mxu0 0.0
    %383 = vmatmul.mubr.f32.gmra.mrb[0].mxu0 %v119
    %v384 = vpop.f32.mrb[0].mxu0
    %v385 = vadd.f32 %v176, %v384
    %v386 = vpop.f32.mrb[0].mxu0
    %387 = vmatprep.mubr.f32.mxu0 0.0
    %388 = vmatmul.mubr.f32.gmra.mrb[0].mxu0 %v120
    %v389 = vpop.f32.mrb[0].mxu0
    %v390 = vadd.f32 %v176, %v389
    %v391 = vpop.f32.mrb[0].mxu0
    %392 = vmatprep.mubr.f32.mxu0 0.0
    %393 = vmatmul.mubr.f32.gmra.mrb[0].mxu0 %v121
    %v394 = vpop.f32.mrb[0].mxu0
    %v395 = vadd.f32 %v176, %v394
    %v396 = vpop.f32.mrb[0].mxu0
    %397 = vmatprep.mubr.f32.mxu0 0.0
    %398 = vmatmul.mubr.f32.gmra.mrb[0].mxu0 %v122
    %v399 = vpop.f32.mrb[0].mxu0
    %v400 = vadd.f32 %v176, %v399
    %v401 = vpop.f32.mrb[0].mxu0
    %402 = vmatprep.mubr.f32.mxu0 0.0
    %403 = vmatmul.mubr.f32.gmra.mrb[0].mxu0 %v123
    %v404 = vpop.f32.mrb[0].mxu0
    %v405 = vadd.f32 %v176, %v404
    %v406 = vpop.f32.mrb[0].mxu0
    %407 = vmatprep.mubr.f32.mxu0 0.0
    %408 = vmatmul.mubr.f32.gmra.mrb[0].mxu0 %v124
    %v409 = vpop.f32.mrb[0].mxu0
    %v410 = vadd.f32 %v176, %v409
    %v411 = vpop.f32.mrb[0].mxu0
    %412 = vmatprep.mubr.f32.mxu0 0.0
    %413 = vmatmul.mubr.f32.gmra.mrb[0].mxu0 %v125
    %v414 = vpop.f32.mrb[0].mxu0
    %v415 = vadd.f32 %v176, %v414
    %v416 = vpop.f32.mrb[0].mxu0
    %417 = vmatprep.mubr.f32.mxu0 0.0
    %418 = vmatmul.mubr.f32.gmra.mrb[0].mxu0 %v126
    %v419 = vpop.f32.mrb[0].mxu0
    %v420 = vadd.f32 %v176, %v419
    %v421 = vpop.f32.mrb[0].mxu0
    %422 = vmatprep.mubr.f32.mxu0 0.0
    %423 = vmatmul.mubr.f32.gmra.mrb[0].mxu0 %v127
    %v424 = vpop.f32.mrb[0].mxu0
    %v425 = vadd.f32 %v176, %v424
    %v426 = vpop.f32.mrb[0].mxu0
    %427 = vmatprep.mubr.f32.mxu0 0.0
    %428 = vmatmul.mubr.f32.gmra.mrb[0].mxu0 %v128
    %v429 = vpop.f32.mrb[0].mxu0
    %v430 = vadd.f32 %v176, %v429
    %v431 = vpop.f32.mrb[0].mxu0
    %432 = vmatprep.mubr.f32.mxu0 0.0
    %433 = vmatmul.mubr.f32.gmra.mrb[0].mxu0 %v129
    %v434 = vpop.f32.mrb[0].mxu0
    %v435 = vadd.f32 %v176, %v434
    %v436 = vpop.f32.mrb[0].mxu0
    %437 = vmatprep.mubr.f32.mxu0 0.0
    %438 = vmatmul.mubr.f32.gmra.mrb[0].mxu0 %v130
    %v439 = vpop.f32.mrb[0].mxu0
    %v440 = vadd.f32 %v176, %v439
    %v441 = vpop.f32.mrb[0].mxu0
    %442 = vmatprep.mubr.f32.mxu0 0.0
    %443 = vmatmul.mubr.f32.gmra.mrb[0].mxu0 %v131
    %v444 = vpop.f32.mrb[0].mxu0
    %v445 = vadd.f32 %v176, %v444
    %v446 = vpop.f32.mrb[0].mxu0
    %447 = vmatprep.mubr.f32.mxu0 0.0
    %448 = vmatmul.mubr.f32.gmra.mrb[0].mxu0 %v132
    %v449 = vpop.f32.mrb[0].mxu0
    %v450 = vadd.f32 %v176, %v449
    %v451 = vpop.f32.mrb[0].mxu0
    %452 = vmatprep.mubr.f32.mxu0 0.0
    %453 = vmatmul.mubr.f32.gmra.mrb[0].mxu0 %v133
    %v454 = vpop.f32.mrb[0].mxu0
    %v455 = vadd.f32 %v176, %v454
    %v456 = vpop.f32.mrb[0].mxu0
    %457 = vmatprep.mubr.f32.mxu0 0.0
    %458 = vmatmul.mubr.f32.gmra.mrb[0].mxu0 %v134
    %v459 = vpop.f32.mrb[0].mxu0
    %v460 = vadd.f32 %v176, %v459
    %v461 = vpop.f32.mrb[0].mxu0
    %462 = vmatprep.mubr.f32.mxu0 0.0
    %463 = vmatmul.mubr.f32.gmra.mrb[0].mxu0 %v135
    %v464 = vpop.f32.mrb[0].mxu0
    %v465 = vadd.f32 %v176, %v464
    %v466 = vpop.f32.mrb[0].mxu0
    %467 = vmatprep.mubr.f32.mxu0 0.0
    %468 = vmatmul.mubr.f32.gmra.mrb[0].mxu0 %v136
    %v469 = vpop.f32.mrb[0].mxu0
    %v470 = vadd.f32 %v176, %v469
    %v471 = vpop.f32.mrb[0].mxu0
    %472 = vmatprep.mubr.f32.mxu0 0.0
    %473 = vmatmul.mubr.f32.gmra.mrb[0].mxu0 %v137
    %v474 = vpop.f32.mrb[0].mxu0
    %v475 = vadd.f32 %v176, %v474
    %v476 = vpop.f32.mrb[0].mxu0
    %477 = vmatprep.mubr.f32.mxu0 0.0
    %478 = vmatmul.mubr.f32.gmra.mrb[0].mxu0 %v138
    %v479 = vpop.f32.mrb[0].mxu0
    %v480 = vadd.f32 %v176, %v479
    %v481 = vpop.f32.mrb[0].mxu0
    %482 = vmatprep.mubr.f32.mxu0 0.0
    %483 = vmatmul.mubr.f32.gmra.mrb[0].mxu0 %v139
    %v484 = vpop.f32.mrb[0].mxu0
    %v485 = vadd.f32 %v176, %v484
    %v486 = vpop.f32.mrb[0].mxu0
    %487 = vmatprep.mubr.f32.mxu0 0.0
    %488 = vmatmul.mubr.f32.gmra.mrb[0].mxu0 %v140
    %v489 = vpop.f32.mrb[0].mxu0
    %v490 = vadd.f32 %v176, %v489
    %v491 = vpop.f32.mrb[0].mxu0
    %492 = vmatprep.mubr.f32.mxu0 0.0
    %493 = vmatmul.mubr.f32.gmra.mrb[0].mxu0 %v141
    %v494 = vpop.f32.mrb[0].mxu0
    %v495 = vadd.f32 %v176, %v494
    %v496 = vpop.f32.mrb[0].mxu0
    %497 = vmatprep.mubr.f32.mxu0 0.0
    %498 = vmatmul.mubr.f32.gmra.mrb[0].mxu0 %v142
    %v499 = vpop.f32.mrb[0].mxu0
    %v500 = vadd.f32 %v176, %v499
    %v501 = vpop.f32.mrb[0].mxu0
    %502 = vmatprep.mubr.f32.mxu0 0.0
    %503 = vmatmul.mubr.f32.gmra.mrb[0].mxu0 %v143
    %v504 = vpop.f32.mrb[0].mxu0
    %v505 = vadd.f32 %v176, %v504
    %v506 = vpop.f32.mrb[0].mxu0
    %507 = vmatprep.mubr.f32.mxu0 0.0
    %508 = vmatmul.mubr.f32.gmra.mrb[0].mxu0 %v144
    %v509 = vpop.f32.mrb[0].mxu0
    %v510 = vadd.f32 %v176, %v509
    %v511 = vpop.f32.mrb[0].mxu0
    %512 = vmatprep.mubr.f32.mxu0 0.0
    %513 = vmatmul.mubr.f32.gmra.mrb[0].mxu0 %v145
    %v514 = vpop.f32.mrb[0].mxu0
    %v515 = vadd.f32 %v176, %v514
    %v516 = vpop.f32.mrb[0].mxu0
    %517 = vmatprep.mubr.f32.mxu0 0.0
    %518 = vmatmul.mubr.f32.gmra.mrb[0].mxu0 %v146
    %v519 = vpop.f32.mrb[0].mxu0
    %v520 = vadd.f32 %v176, %v519
    %v521 = vpop.f32.mrb[0].mxu0
    %522 = vmatprep.mubr.f32.mxu0 0.0
    %523 = vmatmul.mubr.f32.gmra.mrb[0].mxu0 %v147
    %v524 = vpop.f32.mrb[0].mxu0
    %v525 = vadd.f32 %v176, %v524
    %v526 = vpop.f32.mrb[0].mxu0
    %527 = vmatprep.mubr.f32.mxu0 0.0
    %528 = vmatmul.mubr.f32.gmra.mrb[0].mxu0 %v148
    %v529 = vpop.f32.mrb[0].mxu0
    %v530 = vadd.f32 %v176, %v529
    %v531 = vpop.f32.mrb[0].mxu0
    %532 = vmatprep.mubr.f32.mxu0 0.0
    %533 = vmatmul.mubr.f32.gmra.mrb[0].mxu0 %v149
    %v534 = vpop.f32.mrb[0].mxu0
    %v535 = vadd.f32 %v176, %v534
    %v536 = vpop.f32.mrb[0].mxu0
    %537 = vmatprep.mubr.f32.mxu0 0.0
    %538 = vmatmul.mubr.f32.gmra.mrb[0].mxu0 %v150
    %v539 = vpop.f32.mrb[0].mxu0
    %v540 = vadd.f32 %v176, %v539
    %v541 = vpop.f32.mrb[0].mxu0
    %542 = vmatprep.mubr.f32.mxu0 0.0
    %543 = vmatmul.mubr.f32.gmra.mrb[0].mxu0 %v151
    %v544 = vpop.f32.mrb[0].mxu0
    %v545 = vadd.f32 %v176, %v544
    %v546 = vpop.f32.mrb[0].mxu0
    %547 = vmatprep.mubr.f32.mxu0 0.0
    %548 = vmatmul.mubr.f32.gmra.mrb[0].mxu0 %v152
    %v549 = vpop.f32.mrb[0].mxu0
    %v550 = vadd.f32 %v176, %v549
    %v551 = vpop.f32.mrb[0].mxu0
    %552 = vmatprep.mubr.f32.mxu0 0.0
    %553 = vmatmul.mubr.f32.gmra.mrb[0].mxu0 %v153
    %v554 = vpop.f32.mrb[0].mxu0
    %v555 = vadd.f32 %v176, %v554
    %v556 = vpop.f32.mrb[0].mxu0
    %557 = vmatprep.mubr.f32.mxu0 0.0
    %558 = vmatmul.mubr.f32.gmra.mrb[0].mxu0 %v154
    %v559 = vpop.f32.mrb[0].mxu0
    %v560 = vadd.f32 %v176, %v559
    %v561 = vpop.f32.mrb[0].mxu0
    %562 = vdwg.mxu0
    %563 = vst [vmem:[#allocation11] sm:$0xff] %v245
    %564 = vst [vmem:[#allocation11 + $0x8] sm:$0xff] %v250
    %565 = vst [vmem:[#allocation11 + $0x10] sm:$0xff] %v255
    %566 = vst [vmem:[#allocation11 + $0x18] sm:$0xff] %v260
    %567 = vst [vmem:[#allocation11 + $0x20] sm:$0xff] %v265
    %568 = vst [vmem:[#allocation11 + $0x28] sm:$0xff] %v270
    %569 = vst [vmem:[#allocation11 + $0x30] sm:$0xff] %v275
    %570 = vst [vmem:[#allocation11 + $0x38] sm:$0xff] %v280
    %571 = vst [vmem:[#allocation11 + $0x40] sm:$0xff] %v285
    %572 = vst [vmem:[#allocation11 + $0x48] sm:$0xff] %v290
    %573 = vst [vmem:[#allocation11 + $0x50] sm:$0xff] %v295
    %574 = vst [vmem:[#allocation11 + $0x58] sm:$0xff] %v300
    %575 = vst [vmem:[#allocation11 + $0x60] sm:$0xff] %v305
    %576 = vst [vmem:[#allocation11 + $0x68] sm:$0xff] %v310
    %577 = vst [vmem:[#allocation11 + $0x70] sm:$0xff] %v315
    %578 = vst [vmem:[#allocation11 + $0x78] sm:$0xff] %v320
    %579 = vst [vmem:[#allocation11 + $0x80] sm:$0xff] %v325
    %580 = vst [vmem:[#allocation11 + $0x88] sm:$0xff] %v330
    %581 = vst [vmem:[#allocation11 + $0x90] sm:$0xff] %v335
    %582 = vst [vmem:[#allocation11 + $0x98] sm:$0xff] %v340
    %583 = vst [vmem:[#allocation11 + $0xa0] sm:$0xff] %v345
    %584 = vst [vmem:[#allocation11 + $0xa8] sm:$0xff] %v350
    %585 = vst [vmem:[#allocation11 + $0xb0] sm:$0xff] %v355
    %586 = vst [vmem:[#allocation11 + $0xb8] sm:$0xff] %v360
    %587 = vst [vmem:[#allocation11 + $0xc0] sm:$0xff] %v365
    %588 = vst [vmem:[#allocation11 + $0xc8] sm:$0xff] %v370
    %589 = vst [vmem:[#allocation11 + $0xd0] sm:$0xff] %v375
    %590 = vst [vmem:[#allocation11 + $0xd8] sm:$0xff] %v380
    %591 = vst [vmem:[#allocation11 + $0xe0] sm:$0xff] %v385
    %592 = vst [vmem:[#allocation11 + $0xe8] sm:$0xff] %v390
    %593 = vst [vmem:[#allocation11 + $0xf0] sm:$0xff] %v395
    %594 = vst [vmem:[#allocation11 + $0xf8] sm:$0xff] %v400
    %595 = vst [vmem:[#allocation11 + $0x100] sm:$0xff] %v405
    %596 = vst [vmem:[#allocation11 + $0x108] sm:$0xff] %v410
    %597 = vst [vmem:[#allocation11 + $0x110] sm:$0xff] %v415
    %598 = vst [vmem:[#allocation11 + $0x118] sm:$0xff] %v420
    %599 = vst [vmem:[#allocation11 + $0x120] sm:$0xff] %v425
    %600 = vst [vmem:[#allocation11 + $0x128] sm:$0xff] %v430
    %601 = vst [vmem:[#allocation11 + $0x130] sm:$0xff] %v435
    %602 = vst [vmem:[#allocation11 + $0x138] sm:$0xff] %v440
    %603 = vst [vmem:[#allocation11 + $0x140] sm:$0xff] %v445
    %604 = vst [vmem:[#allocation11 + $0x148] sm:$0xff] %v450
    %605 = vst [vmem:[#allocation11 + $0x150] sm:$0xff] %v455
    %606 = vst [vmem:[#allocation11 + $0x158] sm:$0xff] %v460
    %607 = vst [vmem:[#allocation11 + $0x160] sm:$0xff] %v465
    %608 = vst [vmem:[#allocation11 + $0x168] sm:$0xff] %v470
    %609 = vst [vmem:[#allocation11 + $0x170] sm:$0xff] %v475
    %610 = vst [vmem:[#allocation11 + $0x178] sm:$0xff] %v480
    %611 = vst [vmem:[#allocation11 + $0x180] sm:$0xff] %v485
    %612 = vst [vmem:[#allocation11 + $0x188] sm:$0xff] %v490
    %613 = vst [vmem:[#allocation11 + $0x190] sm:$0xff] %v495
    %614 = vst [vmem:[#allocation11 + $0x198] sm:$0xff] %v500
    %615 = vst [vmem:[#allocation11 + $0x1a0] sm:$0xff] %v505
    %616 = vst [vmem:[#allocation11 + $0x1a8] sm:$0xff] %v510
    %617 = vst [vmem:[#allocation11 + $0x1b0] sm:$0xff] %v515
    %618 = vst [vmem:[#allocation11 + $0x1b8] sm:$0xff] %v520
    %619 = vst [vmem:[#allocation11 + $0x1c0] sm:$0xff] %v525
    %620 = vst [vmem:[#allocation11 + $0x1c8] sm:$0xff] %v530
    %621 = vst [vmem:[#allocation11 + $0x1d0] sm:$0xff] %v535
    %622 = vst [vmem:[#allocation11 + $0x1d8] sm:$0xff] %v540
    %623 = vst [vmem:[#allocation11 + $0x1e0] sm:$0xff] %v545
    %624 = vst [vmem:[#allocation11 + $0x1e8] sm:$0xff] %v550
    %625 = vst [vmem:[#allocation11 + $0x1f0] sm:$0xff] %v555
    %626 = vst [vmem:[#allocation11 + $0x1f8] sm:$0xff] %v560
    %v627 = vld [vmem:[#allocation5] sm:$0xff]
    %v628 = vld [vmem:[#allocation5 + $0x8] sm:$0xff]
    %v629 = vld [vmem:[#allocation5 + $0x10] sm:$0xff]
    %v630 = vld [vmem:[#allocation5 + $0x18] sm:$0xff]
    %v631 = vld [vmem:[#allocation5 + $0x20] sm:$0xff]
    %v632 = vld [vmem:[#allocation5 + $0x28] sm:$0xff]
    %v633 = vld [vmem:[#allocation5 + $0x30] sm:$0xff]
    %v634 = vld [vmem:[#allocation5 + $0x38] sm:$0xff]
    %v635 = vld [vmem:[#allocation5 + $0x40] sm:$0xff]
    %v636 = vld [vmem:[#allocation5 + $0x48] sm:$0xff]
    %v637 = vld [vmem:[#allocation5 + $0x50] sm:$0xff]
    %v638 = vld [vmem:[#allocation5 + $0x58] sm:$0xff]
    %v639 = vld [vmem:[#allocation5 + $0x60] sm:$0xff]
    %v640 = vld [vmem:[#allocation5 + $0x68] sm:$0xff]
    %v641 = vld [vmem:[#allocation5 + $0x70] sm:$0xff]
    %v642 = vld [vmem:[#allocation5 + $0x78] sm:$0xff]
    %v643 = vld [vmem:[#allocation5 + $0x80] sm:$0xff]
    %v644 = vld [vmem:[#allocation5 + $0x88] sm:$0xff]
    %v645 = vld [vmem:[#allocation5 + $0x90] sm:$0xff]
    %v646 = vld [vmem:[#allocation5 + $0x98] sm:$0xff]
    %v647 = vld [vmem:[#allocation5 + $0xa0] sm:$0xff]
    %v648 = vld [vmem:[#allocation5 + $0xa8] sm:$0xff]
    %v649 = vld [vmem:[#allocation5 + $0xb0] sm:$0xff]
    %v650 = vld [vmem:[#allocation5 + $0xb8] sm:$0xff]
    %v651 = vld [vmem:[#allocation5 + $0xc0] sm:$0xff]
    %v652 = vld [vmem:[#allocation5 + $0xc8] sm:$0xff]
    %v653 = vld [vmem:[#allocation5 + $0xd0] sm:$0xff]
    %v654 = vld [vmem:[#allocation5 + $0xd8] sm:$0xff]
    %v655 = vld [vmem:[#allocation5 + $0xe0] sm:$0xff]
    %v656 = vld [vmem:[#allocation5 + $0xe8] sm:$0xff]
    %v657 = vld [vmem:[#allocation5 + $0xf0] sm:$0xff]
    %v658 = vld [vmem:[#allocation5 + $0xf8] sm:$0xff]
    %v659 = vld [vmem:[#allocation5 + $0x100] sm:$0xff]
    %v660 = vld [vmem:[#allocation5 + $0x108] sm:$0xff]
    %v661 = vld [vmem:[#allocation5 + $0x110] sm:$0xff]
    %v662 = vld [vmem:[#allocation5 + $0x118] sm:$0xff]
    %v663 = vld [vmem:[#allocation5 + $0x120] sm:$0xff]
    %v664 = vld [vmem:[#allocation5 + $0x128] sm:$0xff]
    %v665 = vld [vmem:[#allocation5 + $0x130] sm:$0xff]
    %v666 = vld [vmem:[#allocation5 + $0x138] sm:$0xff]
    %v667 = vld [vmem:[#allocation5 + $0x140] sm:$0xff]
    %v668 = vld [vmem:[#allocation5 + $0x148] sm:$0xff]
    %v669 = vld [vmem:[#allocation5 + $0x150] sm:$0xff]
    %v670 = vld [vmem:[#allocation5 + $0x158] sm:$0xff]
    %v671 = vld [vmem:[#allocation5 + $0x160] sm:$0xff]
    %v672 = vld [vmem:[#allocation5 + $0x168] sm:$0xff]
    %v673 = vld [vmem:[#allocation5 + $0x170] sm:$0xff]
    %v674 = vld [vmem:[#allocation5 + $0x178] sm:$0xff]
    %v675 = vld [vmem:[#allocation5 + $0x180] sm:$0xff]
    %v676 = vld [vmem:[#allocation5 + $0x188] sm:$0xff]
    %v677 = vld [vmem:[#allocation5 + $0x190] sm:$0xff]
    %v678 = vld [vmem:[#allocation5 + $0x198] sm:$0xff]
    %v679 = vld [vmem:[#allocation5 + $0x1a0] sm:$0xff]
    %v680 = vld [vmem:[#allocation5 + $0x1a8] sm:$0xff]
    %v681 = vld [vmem:[#allocation5 + $0x1b0] sm:$0xff]
    %v682 = vld [vmem:[#allocation5 + $0x1b8] sm:$0xff]
    %v683 = vld [vmem:[#allocation5 + $0x1c0] sm:$0xff]
    %v684 = vld [vmem:[#allocation5 + $0x1c8] sm:$0xff]
    %v685 = vld [vmem:[#allocation5 + $0x1d0] sm:$0xff]
    %v686 = vld [vmem:[#allocation5 + $0x1d8] sm:$0xff]
    %v687 = vld [vmem:[#allocation5 + $0x1e0] sm:$0xff]
    %v688 = vld [vmem:[#allocation5 + $0x1e8] sm:$0xff]
    %v689 = vld [vmem:[#allocation5 + $0x1f0] sm:$0xff]
    %v690 = vld [vmem:[#allocation5 + $0x1f8] sm:$0xff]
    %v691 = vld [vmem:[#allocation8 + $0x8] sm:$0xff]
    %v692 = vld [vmem:[#allocation8 + $0x20] sm:$0xff]
    %v693 = vld [vmem:[#allocation8 + $0x38] sm:$0xff]
    %v694 = vld [vmem:[#allocation8 + $0x50] sm:$0xff]
    %v695 = vld [vmem:[#allocation8 + $0x68] sm:$0xff]
    %v696 = vld [vmem:[#allocation8 + $0x80] sm:$0xff]
    %v697 = vld [vmem:[#allocation8 + $0x98] sm:$0xff]
    %v698 = vld [vmem:[#allocation8 + $0xb0] sm:$0xff]
    %v699 = vld [vmem:[#allocation8 + $0xc8] sm:$0xff]
    %v700 = vld [vmem:[#allocation8 + $0xe0] sm:$0xff]
    %v701 = vld [vmem:[#allocation8 + $0xf8] sm:$0xff]
    %v702 = vld [vmem:[#allocation8 + $0x110] sm:$0xff]
    %v703 = vld [vmem:[#allocation8 + $0x128] sm:$0xff]
    %v704 = vld [vmem:[#allocation8 + $0x140] sm:$0xff]
    %v705 = vld [vmem:[#allocation8 + $0x158] sm:$0xff]
    %v706 = vld [vmem:[#allocation8 + $0x170] sm:$0xff]
    %v707 = vld [vmem:[#allocation10 + $0x1] sm:$0x1]
    %v709 = vlaneseq
    %v710 = vshrl.u32 %v709, 7
    %v711 = vsub.s32 0, %v710
    %v712 = vrot.slane %v707, %v711
    %714 = vmatprep.subr.mxu0 0.0
    %715 = vmatpush1.msra.mxu0 %v691
    %716 = vmatprep.subr.mxu0 0.0
    %717 = vmatpush1.msra.mxu0 %v692
    %718 = vmatprep.subr.mxu0 0.0
    %719 = vmatpush1.msra.mxu0 %v693
    %720 = vmatprep.subr.mxu0 0.0
    %721 = vmatpush1.msra.mxu0 %v694
    %722 = vmatprep.subr.mxu0 0.0
    %723 = vmatpush1.msra.mxu0 %v695
    %724 = vmatprep.subr.mxu0 0.0
    %725 = vmatpush1.msra.mxu0 %v696
    %726 = vmatprep.subr.mxu0 0.0
    %727 = vmatpush1.msra.mxu0 %v697
    %728 = vmatprep.subr.mxu0 0.0
    %729 = vmatpush1.msra.mxu0 %v698
    %730 = vmatprep.subr.mxu0 0.0
    %731 = vmatpush1.msra.mxu0 %v699
    %732 = vmatprep.subr.mxu0 0.0
    %733 = vmatpush1.msra.mxu0 %v700
    %734 = vmatprep.subr.mxu0 0.0
    %735 = vmatpush1.msra.mxu0 %v701
    %736 = vmatprep.subr.mxu0 0.0
    %737 = vmatpush1.msra.mxu0 %v702
    %738 = vmatprep.subr.mxu0 0.0
    %739 = vmatpush1.msra.mxu0 %v703
    %740 = vmatprep.subr.mxu0 0.0
    %741 = vmatpush1.msra.mxu0 %v704
    %742 = vmatprep.subr.mxu0 0.0
    %743 = vmatpush1.msra.mxu0 %v705
    %744 = vmatprep.subr.mxu0 0.0
    %745 = vmatpush1.msra.mxu0 %v706
    %746 = vmatprep.subr.mxu0 0.0
    %747 = vmatpush1.msra.mxu0 0.0
    %748 = vmatprep.subr.mxu0 0.0
    %749 = vmatpush1.msra.mxu0 0.0
    %750 = vmatprep.subr.mxu0 0.0
    %751 = vmatpush1.msra.mxu0 0.0
    %752 = vmatprep.subr.mxu0 0.0
    %753 = vmatpush1.msra.mxu0 0.0
    %754 = vmatprep.subr.mxu0 0.0
    %755 = vmatpush1.msra.mxu0 0.0
    %756 = vmatprep.subr.mxu0 0.0
    %757 = vmatpush1.msra.mxu0 0.0
    %758 = vmatprep.subr.mxu0 0.0
    %759 = vmatpush1.msra.mxu0 0.0
    %760 = vmatprep.subr.mxu0 0.0
    %761 = vmatpush1.msra.mxu0 0.0
    %762 = vmatprep.subr.mxu0 0.0
    %763 = vmatpush1.msra.mxu0 0.0
    %764 = vmatprep.subr.mxu0 0.0
    %765 = vmatpush1.msra.mxu0 0.0
    %766 = vmatprep.subr.mxu0 0.0
    %767 = vmatpush1.msra.mxu0 0.0
    %768 = vmatprep.subr.mxu0 0.0
    %769 = vmatpush1.msra.mxu0 0.0
    %770 = vmatprep.subr.mxu0 0.0
    %771 = vmatpush1.msra.mxu0 0.0
    %772 = vmatprep.subr.mxu0 0.0
    %773 = vmatpush1.msra.mxu0 0.0
    %774 = vmatprep.subr.mxu0 0.0
    %775 = vmatpush1.msra.mxu0 0.0
    %776 = vmatprep.subr.mxu0 0.0
    %777 = vmatpush1.msra.mxu0 0.0
    %778 = vmatprep.mubr.f32.mxu0 0.0
    %779 = vmatmul.mubr.f32.gmra.mrb[0].mxu0 %v627
    %v780 = vpop.f32.mrb[0].mxu0
    %v781 = vadd.f32 %v712, %v780
    %v782 = vpop.f32.mrb[0].mxu0
    %783 = vmatprep.mubr.f32.mxu0 0.0
    %784 = vmatmul.mubr.f32.gmra.mrb[0].mxu0 %v628
    %v785 = vpop.f32.mrb[0].mxu0
    %v786 = vadd.f32 %v712, %v785
    %v787 = vpop.f32.mrb[0].mxu0
    %788 = vmatprep.mubr.f32.mxu0 0.0
    %789 = vmatmul.mubr.f32.gmra.mrb[0].mxu0 %v629
    %v790 = vpop.f32.mrb[0].mxu0
    %v791 = vadd.f32 %v712, %v790
    %v792 = vpop.f32.mrb[0].mxu0
    %793 = vmatprep.mubr.f32.mxu0 0.0
    %794 = vmatmul.mubr.f32.gmra.mrb[0].mxu0 %v630
    %v795 = vpop.f32.mrb[0].mxu0
    %v796 = vadd.f32 %v712, %v795
    %v797 = vpop.f32.mrb[0].mxu0
    %798 = vmatprep.mubr.f32.mxu0 0.0
    %799 = vmatmul.mubr.f32.gmra.mrb[0].mxu0 %v631
    %v800 = vpop.f32.mrb[0].mxu0
    %v801 = vadd.f32 %v712, %v800
    %v802 = vpop.f32.mrb[0].mxu0
    %803 = vmatprep.mubr.f32.mxu0 0.0
    %804 = vmatmul.mubr.f32.gmra.mrb[0].mxu0 %v632
    %v805 = vpop.f32.mrb[0].mxu0
    %v806 = vadd.f32 %v712, %v805
    %v807 = vpop.f32.mrb[0].mxu0
    %808 = vmatprep.mubr.f32.mxu0 0.0
    %809 = vmatmul.mubr.f32.gmra.mrb[0].mxu0 %v633
    %v810 = vpop.f32.mrb[0].mxu0
    %v811 = vadd.f32 %v712, %v810
    %v812 = vpop.f32.mrb[0].mxu0
    %813 = vmatprep.mubr.f32.mxu0 0.0
    %814 = vmatmul.mubr.f32.gmra.mrb[0].mxu0 %v634
    %v815 = vpop.f32.mrb[0].mxu0
    %v816 = vadd.f32 %v712, %v815
    %v817 = vpop.f32.mrb[0].mxu0
    %818 = vmatprep.mubr.f32.mxu0 0.0
    %819 = vmatmul.mubr.f32.gmra.mrb[0].mxu0 %v635
    %v820 = vpop.f32.mrb[0].mxu0
    %v821 = vadd.f32 %v712, %v820
    %v822 = vpop.f32.mrb[0].mxu0
    %823 = vmatprep.mubr.f32.mxu0 0.0
    %824 = vmatmul.mubr.f32.gmra.mrb[0].mxu0 %v636
    %v825 = vpop.f32.mrb[0].mxu0
    %v826 = vadd.f32 %v712, %v825
    %v827 = vpop.f32.mrb[0].mxu0
    %828 = vmatprep.mubr.f32.mxu0 0.0
    %829 = vmatmul.mubr.f32.gmra.mrb[0].mxu0 %v637
    %v830 = vpop.f32.mrb[0].mxu0
    %v831 = vadd.f32 %v712, %v830
    %v832 = vpop.f32.mrb[0].mxu0
    %833 = vmatprep.mubr.f32.mxu0 0.0
    %834 = vmatmul.mubr.f32.gmra.mrb[0].mxu0 %v638
    %v835 = vpop.f32.mrb[0].mxu0
    %v836 = vadd.f32 %v712, %v835
    %v837 = vpop.f32.mrb[0].mxu0
    %838 = vmatprep.mubr.f32.mxu0 0.0
    %839 = vmatmul.mubr.f32.gmra.mrb[0].mxu0 %v639
    %v840 = vpop.f32.mrb[0].mxu0
    %v841 = vadd.f32 %v712, %v840
    %v842 = vpop.f32.mrb[0].mxu0
    %843 = vmatprep.mubr.f32.mxu0 0.0
    %844 = vmatmul.mubr.f32.gmra.mrb[0].mxu0 %v640
    %v845 = vpop.f32.mrb[0].mxu0
    %v846 = vadd.f32 %v712, %v845
    %v847 = vpop.f32.mrb[0].mxu0
    %848 = vmatprep.mubr.f32.mxu0 0.0
    %849 = vmatmul.mubr.f32.gmra.mrb[0].mxu0 %v641
    %v850 = vpop.f32.mrb[0].mxu0
    %v851 = vadd.f32 %v712, %v850
    %v852 = vpop.f32.mrb[0].mxu0
    %853 = vmatprep.mubr.f32.mxu0 0.0
    %854 = vmatmul.mubr.f32.gmra.mrb[0].mxu0 %v642
    %v855 = vpop.f32.mrb[0].mxu0
    %v856 = vadd.f32 %v712, %v855
    %v857 = vpop.f32.mrb[0].mxu0
    %858 = vmatprep.mubr.f32.mxu0 0.0
    %859 = vmatmul.mubr.f32.gmra.mrb[0].mxu0 %v643
    %v860 = vpop.f32.mrb[0].mxu0
    %v861 = vadd.f32 %v712, %v860
    %v862 = vpop.f32.mrb[0].mxu0
    %863 = vmatprep.mubr.f32.mxu0 0.0
    %864 = vmatmul.mubr.f32.gmra.mrb[0].mxu0 %v644
    %v865 = vpop.f32.mrb[0].mxu0
    %v866 = vadd.f32 %v712, %v865
    %v867 = vpop.f32.mrb[0].mxu0
    %868 = vmatprep.mubr.f32.mxu0 0.0
    %869 = vmatmul.mubr.f32.gmra.mrb[0].mxu0 %v645
    %v870 = vpop.f32.mrb[0].mxu0
    %v871 = vadd.f32 %v712, %v870
    %v872 = vpop.f32.mrb[0].mxu0
    %873 = vmatprep.mubr.f32.mxu0 0.0
    %874 = vmatmul.mubr.f32.gmra.mrb[0].mxu0 %v646
    %v875 = vpop.f32.mrb[0].mxu0
    %v876 = vadd.f32 %v712, %v875
    %v877 = vpop.f32.mrb[0].mxu0
    %878 = vmatprep.mubr.f32.mxu0 0.0
    %879 = vmatmul.mubr.f32.gmra.mrb[0].mxu0 %v647
    %v880 = vpop.f32.mrb[0].mxu0
    %v881 = vadd.f32 %v712, %v880
    %v882 = vpop.f32.mrb[0].mxu0
    %883 = vmatprep.mubr.f32.mxu0 0.0
    %884 = vmatmul.mubr.f32.gmra.mrb[0].mxu0 %v648
    %v885 = vpop.f32.mrb[0].mxu0
    %v886 = vadd.f32 %v712, %v885
    %v887 = vpop.f32.mrb[0].mxu0
    %888 = vmatprep.mubr.f32.mxu0 0.0
    %889 = vmatmul.mubr.f32.gmra.mrb[0].mxu0 %v649
    %v890 = vpop.f32.mrb[0].mxu0
    %v891 = vadd.f32 %v712, %v890
    %v892 = vpop.f32.mrb[0].mxu0
    %893 = vmatprep.mubr.f32.mxu0 0.0
    %894 = vmatmul.mubr.f32.gmra.mrb[0].mxu0 %v650
    %v895 = vpop.f32.mrb[0].mxu0
    %v896 = vadd.f32 %v712, %v895
    %v897 = vpop.f32.mrb[0].mxu0
    %898 = vmatprep.mubr.f32.mxu0 0.0
    %899 = vmatmul.mubr.f32.gmra.mrb[0].mxu0 %v651
    %v900 = vpop.f32.mrb[0].mxu0
    %v901 = vadd.f32 %v712, %v900
    %v902 = vpop.f32.mrb[0].mxu0
    %903 = vmatprep.mubr.f32.mxu0 0.0
    %904 = vmatmul.mubr.f32.gmra.mrb[0].mxu0 %v652
    %v905 = vpop.f32.mrb[0].mxu0
    %v906 = vadd.f32 %v712, %v905
    %v907 = vpop.f32.mrb[0].mxu0
    %908 = vmatprep.mubr.f32.mxu0 0.0
    %909 = vmatmul.mubr.f32.gmra.mrb[0].mxu0 %v653
    %v910 = vpop.f32.mrb[0].mxu0
    %v911 = vadd.f32 %v712, %v910
    %v912 = vpop.f32.mrb[0].mxu0
    %913 = vmatprep.mubr.f32.mxu0 0.0
    %914 = vmatmul.mubr.f32.gmra.mrb[0].mxu0 %v654
    %v915 = vpop.f32.mrb[0].mxu0
    %v916 = vadd.f32 %v712, %v915
    %v917 = vpop.f32.mrb[0].mxu0
    %918 = vmatprep.mubr.f32.mxu0 0.0
    %919 = vmatmul.mubr.f32.gmra.mrb[0].mxu0 %v655
    %v920 = vpop.f32.mrb[0].mxu0
    %v921 = vadd.f32 %v712, %v920
    %v922 = vpop.f32.mrb[0].mxu0
    %923 = vmatprep.mubr.f32.mxu0 0.0
    %924 = vmatmul.mubr.f32.gmra.mrb[0].mxu0 %v656
    %v925 = vpop.f32.mrb[0].mxu0
    %v926 = vadd.f32 %v712, %v925
    %v927 = vpop.f32.mrb[0].mxu0
    %928 = vmatprep.mubr.f32.mxu0 0.0
    %929 = vmatmul.mubr.f32.gmra.mrb[0].mxu0 %v657
    %v930 = vpop.f32.mrb[0].mxu0
    %v931 = vadd.f32 %v712, %v930
    %v932 = vpop.f32.mrb[0].mxu0
    %933 = vmatprep.mubr.f32.mxu0 0.0
    %934 = vmatmul.mubr.f32.gmra.mrb[0].mxu0 %v658
    %v935 = vpop.f32.mrb[0].mxu0
    %v936 = vadd.f32 %v712, %v935
    %v937 = vpop.f32.mrb[0].mxu0
    %938 = vmatprep.mubr.f32.mxu0 0.0
    %939 = vmatmul.mubr.f32.gmra.mrb[0].mxu0 %v659
    %v940 = vpop.f32.mrb[0].mxu0
    %v941 = vadd.f32 %v712, %v940
    %v942 = vpop.f32.mrb[0].mxu0
    %943 = vmatprep.mubr.f32.mxu0 0.0
    %944 = vmatmul.mubr.f32.gmra.mrb[0].mxu0 %v660
    %v945 = vpop.f32.mrb[0].mxu0
    %v946 = vadd.f32 %v712, %v945
    %v947 = vpop.f32.mrb[0].mxu0
    %948 = vmatprep.mubr.f32.mxu0 0.0
    %949 = vmatmul.mubr.f32.gmra.mrb[0].mxu0 %v661
    %v950 = vpop.f32.mrb[0].mxu0
    %v951 = vadd.f32 %v712, %v950
    %v952 = vpop.f32.mrb[0].mxu0
    %953 = vmatprep.mubr.f32.mxu0 0.0
    %954 = vmatmul.mubr.f32.gmra.mrb[0].mxu0 %v662
    %v955 = vpop.f32.mrb[0].mxu0
    %v956 = vadd.f32 %v712, %v955
    %v957 = vpop.f32.mrb[0].mxu0
    %958 = vmatprep.mubr.f32.mxu0 0.0
    %959 = vmatmul.mubr.f32.gmra.mrb[0].mxu0 %v663
    %v960 = vpop.f32.mrb[0].mxu0
    %v961 = vadd.f32 %v712, %v960
    %v962 = vpop.f32.mrb[0].mxu0
    %963 = vmatprep.mubr.f32.mxu0 0.0
    %964 = vmatmul.mubr.f32.gmra.mrb[0].mxu0 %v664
    %v965 = vpop.f32.mrb[0].mxu0
    %v966 = vadd.f32 %v712, %v965
    %v967 = vpop.f32.mrb[0].mxu0
    %968 = vmatprep.mubr.f32.mxu0 0.0
    %969 = vmatmul.mubr.f32.gmra.mrb[0].mxu0 %v665
    %v970 = vpop.f32.mrb[0].mxu0
    %v971 = vadd.f32 %v712, %v970
    %v972 = vpop.f32.mrb[0].mxu0
    %973 = vmatprep.mubr.f32.mxu0 0.0
    %974 = vmatmul.mubr.f32.gmra.mrb[0].mxu0 %v666
    %v975 = vpop.f32.mrb[0].mxu0
    %v976 = vadd.f32 %v712, %v975
    %v977 = vpop.f32.mrb[0].mxu0
    %978 = vmatprep.mubr.f32.mxu0 0.0
    %979 = vmatmul.mubr.f32.gmra.mrb[0].mxu0 %v667
    %v980 = vpop.f32.mrb[0].mxu0
    %v981 = vadd.f32 %v712, %v980
    %v982 = vpop.f32.mrb[0].mxu0
    %983 = vmatprep.mubr.f32.mxu0 0.0
    %984 = vmatmul.mubr.f32.gmra.mrb[0].mxu0 %v668
    %v985 = vpop.f32.mrb[0].mxu0
    %v986 = vadd.f32 %v712, %v985
    %v987 = vpop.f32.mrb[0].mxu0
    %988 = vmatprep.mubr.f32.mxu0 0.0
    %989 = vmatmul.mubr.f32.gmra.mrb[0].mxu0 %v669
    %v990 = vpop.f32.mrb[0].mxu0
    %v991 = vadd.f32 %v712, %v990
    %v992 = vpop.f32.mrb[0].mxu0
    %993 = vmatprep.mubr.f32.mxu0 0.0
    %994 = vmatmul.mubr.f32.gmra.mrb[0].mxu0 %v670
    %v995 = vpop.f32.mrb[0].mxu0
    %v996 = vadd.f32 %v712, %v995
    %v997 = vpop.f32.mrb[0].mxu0
    %998 = vmatprep.mubr.f32.mxu0 0.0
    %999 = vmatmul.mubr.f32.gmra.mrb[0].mxu0 %v671
    %v1000 = vpop.f32.mrb[0].mxu0
    %v1001 = vadd.f32 %v712, %v1000
    %v1002 = vpop.f32.mrb[0].mxu0
    %1003 = vmatprep.mubr.f32.mxu0 0.0
    %1004 = vmatmul.mubr.f32.gmra.mrb[0].mxu0 %v672
    %v1005 = vpop.f32.mrb[0].mxu0
    %v1006 = vadd.f32 %v712, %v1005
    %v1007 = vpop.f32.mrb[0].mxu0
    %1008 = vmatprep.mubr.f32.mxu0 0.0
    %1009 = vmatmul.mubr.f32.gmra.mrb[0].mxu0 %v673
    %v1010 = vpop.f32.mrb[0].mxu0
    %v1011 = vadd.f32 %v712, %v1010
    %v1012 = vpop.f32.mrb[0].mxu0
    %1013 = vmatprep.mubr.f32.mxu0 0.0
    %1014 = vmatmul.mubr.f32.gmra.mrb[0].mxu0 %v674
    %v1015 = vpop.f32.mrb[0].mxu0
    %v1016 = vadd.f32 %v712, %v1015
    %v1017 = vpop.f32.mrb[0].mxu0
    %1018 = vmatprep.mubr.f32.mxu0 0.0
    %1019 = vmatmul.mubr.f32.gmra.mrb[0].mxu0 %v675
    %v1020 = vpop.f32.mrb[0].mxu0
    %v1021 = vadd.f32 %v712, %v1020
    %v1022 = vpop.f32.mrb[0].mxu0
    %1023 = vmatprep.mubr.f32.mxu0 0.0
    %1024 = vmatmul.mubr.f32.gmra.mrb[0].mxu0 %v676
    %v1025 = vpop.f32.mrb[0].mxu0
    %v1026 = vadd.f32 %v712, %v1025
    %v1027 = vpop.f32.mrb[0].mxu0
    %1028 = vmatprep.mubr.f32.mxu0 0.0
    %1029 = vmatmul.mubr.f32.gmra.mrb[0].mxu0 %v677
    %v1030 = vpop.f32.mrb[0].mxu0
    %v1031 = vadd.f32 %v712, %v1030
    %v1032 = vpop.f32.mrb[0].mxu0
    %1033 = vmatprep.mubr.f32.mxu0 0.0
    %1034 = vmatmul.mubr.f32.gmra.mrb[0].mxu0 %v678
    %v1035 = vpop.f32.mrb[0].mxu0
    %v1036 = vadd.f32 %v712, %v1035
    %v1037 = vpop.f32.mrb[0].mxu0
    %1038 = vmatprep.mubr.f32.mxu0 0.0
    %1039 = vmatmul.mubr.f32.gmra.mrb[0].mxu0 %v679
    %v1040 = vpop.f32.mrb[0].mxu0
    %v1041 = vadd.f32 %v712, %v1040
    %v1042 = vpop.f32.mrb[0].mxu0
    %1043 = vmatprep.mubr.f32.mxu0 0.0
    %1044 = vmatmul.mubr.f32.gmra.mrb[0].mxu0 %v680
    %v1045 = vpop.f32.mrb[0].mxu0
    %v1046 = vadd.f32 %v712, %v1045
    %v1047 = vpop.f32.mrb[0].mxu0
    %1048 = vmatprep.mubr.f32.mxu0 0.0
    %1049 = vmatmul.mubr.f32.gmra.mrb[0].mxu0 %v681
    %v1050 = vpop.f32.mrb[0].mxu0
    %v1051 = vadd.f32 %v712, %v1050
    %v1052 = vpop.f32.mrb[0].mxu0
    %1053 = vmatprep.mubr.f32.mxu0 0.0
    %1054 = vmatmul.mubr.f32.gmra.mrb[0].mxu0 %v682
    %v1055 = vpop.f32.mrb[0].mxu0
    %v1056 = vadd.f32 %v712, %v1055
    %v1057 = vpop.f32.mrb[0].mxu0
    %1058 = vmatprep.mubr.f32.mxu0 0.0
    %1059 = vmatmul.mubr.f32.gmra.mrb[0].mxu0 %v683
    %v1060 = vpop.f32.mrb[0].mxu0
    %v1061 = vadd.f32 %v712, %v1060
    %v1062 = vpop.f32.mrb[0].mxu0
    %1063 = vmatprep.mubr.f32.mxu0 0.0
    %1064 = vmatmul.mubr.f32.gmra.mrb[0].mxu0 %v684
    %v1065 = vpop.f32.mrb[0].mxu0
    %v1066 = vadd.f32 %v712, %v1065
    %v1067 = vpop.f32.mrb[0].mxu0
    %1068 = vmatprep.mubr.f32.mxu0 0.0
    %1069 = vmatmul.mubr.f32.gmra.mrb[0].mxu0 %v685
    %v1070 = vpop.f32.mrb[0].mxu0
    %v1071 = vadd.f32 %v712, %v1070
    %v1072 = vpop.f32.mrb[0].mxu0
    %1073 = vmatprep.mubr.f32.mxu0 0.0
    %1074 = vmatmul.mubr.f32.gmra.mrb[0].mxu0 %v686
    %v1075 = vpop.f32.mrb[0].mxu0
    %v1076 = vadd.f32 %v712, %v1075
    %v1077 = vpop.f32.mrb[0].mxu0
    %1078 = vmatprep.mubr.f32.mxu0 0.0
    %1079 = vmatmul.mubr.f32.gmra.mrb[0].mxu0 %v687
    %v1080 = vpop.f32.mrb[0].mxu0
    %v1081 = vadd.f32 %v712, %v1080
    %v1082 = vpop.f32.mrb[0].mxu0
    %1083 = vmatprep.mubr.f32.mxu0 0.0
    %1084 = vmatmul.mubr.f32.gmra.mrb[0].mxu0 %v688
    %v1085 = vpop.f32.mrb[0].mxu0
    %v1086 = vadd.f32 %v712, %v1085
    %v1087 = vpop.f32.mrb[0].mxu0
    %1088 = vmatprep.mubr.f32.mxu0 0.0
    %1089 = vmatmul.mubr.f32.gmra.mrb[0].mxu0 %v689
    %v1090 = vpop.f32.mrb[0].mxu0
    %v1091 = vadd.f32 %v712, %v1090
    %v1092 = vpop.f32.mrb[0].mxu0
    %1093 = vmatprep.mubr.f32.mxu0 0.0
    %1094 = vmatmul.mubr.f32.gmra.mrb[0].mxu0 %v690
    %v1095 = vpop.f32.mrb[0].mxu0
    %v1096 = vadd.f32 %v712, %v1095
    %v1097 = vpop.f32.mrb[0].mxu0
    %1098 = vdwg.mxu0
    %1099 = vst [vmem:[#allocation12] sm:$0xff] %v781
    %1100 = vst [vmem:[#allocation12 + $0x8] sm:$0xff] %v786
    %1101 = vst [vmem:[#allocation12 + $0x10] sm:$0xff] %v791
    %1102 = vst [vmem:[#allocation12 + $0x18] sm:$0xff] %v796
    %1103 = vst [vmem:[#allocation12 + $0x20] sm:$0xff] %v801
    %1104 = vst [vmem:[#allocation12 + $0x28] sm:$0xff] %v806
    %1105 = vst [vmem:[#allocation12 + $0x30] sm:$0xff] %v811
    %1106 = vst [vmem:[#allocation12 + $0x38] sm:$0xff] %v816
    %1107 = vst [vmem:[#allocation12 + $0x40] sm:$0xff] %v821
    %1108 = vst [vmem:[#allocation12 + $0x48] sm:$0xff] %v826
    %1109 = vst [vmem:[#allocation12 + $0x50] sm:$0xff] %v831
    %1110 = vst [vmem:[#allocation12 + $0x58] sm:$0xff] %v836
    %1111 = vst [vmem:[#allocation12 + $0x60] sm:$0xff] %v841
    %1112 = vst [vmem:[#allocation12 + $0x68] sm:$0xff] %v846
    %1113 = vst [vmem:[#allocation12 + $0x70] sm:$0xff] %v851
    %1114 = vst [vmem:[#allocation12 + $0x78] sm:$0xff] %v856
    %1115 = vst [vmem:[#allocation12 + $0x80] sm:$0xff] %v861
    %1116 = vst [vmem:[#allocation12 + $0x88] sm:$0xff] %v866
    %1117 = vst [vmem:[#allocation12 + $0x90] sm:$0xff] %v871
    %1118 = vst [vmem:[#allocation12 + $0x98] sm:$0xff] %v876
    %1119 = vst [vmem:[#allocation12 + $0xa0] sm:$0xff] %v881
    %1120 = vst [vmem:[#allocation12 + $0xa8] sm:$0xff] %v886
    %1121 = vst [vmem:[#allocation12 + $0xb0] sm:$0xff] %v891
    %1122 = vst [vmem:[#allocation12 + $0xb8] sm:$0xff] %v896
    %1123 = vst [vmem:[#allocation12 + $0xc0] sm:$0xff] %v901
    %1124 = vst [vmem:[#allocation12 + $0xc8] sm:$0xff] %v906
    %1125 = vst [vmem:[#allocation12 + $0xd0] sm:$0xff] %v911
    %1126 = vst [vmem:[#allocation12 + $0xd8] sm:$0xff] %v916
    %1127 = vst [vmem:[#allocation12 + $0xe0] sm:$0xff] %v921
    %1128 = vst [vmem:[#allocation12 + $0xe8] sm:$0xff] %v926
    %1129 = vst [vmem:[#allocation12 + $0xf0] sm:$0xff] %v931
    %1130 = vst [vmem:[#allocation12 + $0xf8] sm:$0xff] %v936
    %1131 = vst [vmem:[#allocation12 + $0x100] sm:$0xff] %v941
    %1132 = vst [vmem:[#allocation12 + $0x108] sm:$0xff] %v946
    %1133 = vst [vmem:[#allocation12 + $0x110] sm:$0xff] %v951
    %1134 = vst [vmem:[#allocation12 + $0x118] sm:$0xff] %v956
    %1135 = vst [vmem:[#allocation12 + $0x120] sm:$0xff] %v961
    %1136 = vst [vmem:[#allocation12 + $0x128] sm:$0xff] %v966
    %1137 = vst [vmem:[#allocation12 + $0x130] sm:$0xff] %v971
    %1138 = vst [vmem:[#allocation12 + $0x138] sm:$0xff] %v976
    %1139 = vst [vmem:[#allocation12 + $0x140] sm:$0xff] %v981
    %1140 = vst [vmem:[#allocation12 + $0x148] sm:$0xff] %v986
    %1141 = vst [vmem:[#allocation12 + $0x150] sm:$0xff] %v991
    %1142 = vst [vmem:[#allocation12 + $0x158] sm:$0xff] %v996
    %1143 = vst [vmem:[#allocation12 + $0x160] sm:$0xff] %v1001
    %1144 = vst [vmem:[#allocation12 + $0x168] sm:$0xff] %v1006
    %1145 = vst [vmem:[#allocation12 + $0x170] sm:$0xff] %v1011
    %1146 = vst [vmem:[#allocation12 + $0x178] sm:$0xff] %v1016
    %1147 = vst [vmem:[#allocation12 + $0x180] sm:$0xff] %v1021
    %1148 = vst [vmem:[#allocation12 + $0x188] sm:$0xff] %v1026
    %1149 = vst [vmem:[#allocation12 + $0x190] sm:$0xff] %v1031
    %1150 = vst [vmem:[#allocation12 + $0x198] sm:$0xff] %v1036
    %1151 = vst [vmem:[#allocation12 + $0x1a0] sm:$0xff] %v1041
    %1152 = vst [vmem:[#allocation12 + $0x1a8] sm:$0xff] %v1046
    %1153 = vst [vmem:[#allocation12 + $0x1b0] sm:$0xff] %v1051
    %1154 = vst [vmem:[#allocation12 + $0x1b8] sm:$0xff] %v1056
    %1155 = vst [vmem:[#allocation12 + $0x1c0] sm:$0xff] %v1061
    %1156 = vst [vmem:[#allocation12 + $0x1c8] sm:$0xff] %v1066
    %1157 = vst [vmem:[#allocation12 + $0x1d0] sm:$0xff] %v1071
    %1158 = vst [vmem:[#allocation12 + $0x1d8] sm:$0xff] %v1076
    %1159 = vst [vmem:[#allocation12 + $0x1e0] sm:$0xff] %v1081
    %1160 = vst [vmem:[#allocation12 + $0x1e8] sm:$0xff] %v1086
    %1161 = vst [vmem:[#allocation12 + $0x1f0] sm:$0xff] %v1091
    %1162 = vst [vmem:[#allocation12 + $0x1f8] sm:$0xff] %v1096
    %v1163 = vld [vmem:[#allocation7] sm:$0xff]
    %v1164 = vld [vmem:[#allocation7 + $0x8] sm:$0xff]
    %v1165 = vld [vmem:[#allocation7 + $0x10] sm:$0xff]
    %v1166 = vld [vmem:[#allocation7 + $0x18] sm:$0xff]
    %v1167 = vld [vmem:[#allocation7 + $0x20] sm:$0xff]
    %v1168 = vld [vmem:[#allocation7 + $0x28] sm:$0xff]
    %v1169 = vld [vmem:[#allocation7 + $0x30] sm:$0xff]
    %v1170 = vld [vmem:[#allocation7 + $0x38] sm:$0xff]
    %v1171 = vld [vmem:[#allocation7 + $0x40] sm:$0xff]
    %v1172 = vld [vmem:[#allocation7 + $0x48] sm:$0xff]
    %v1173 = vld [vmem:[#allocation7 + $0x50] sm:$0xff]
    %v1174 = vld [vmem:[#allocation7 + $0x58] sm:$0xff]
    %v1175 = vld [vmem:[#allocation7 + $0x60] sm:$0xff]
    %v1176 = vld [vmem:[#allocation7 + $0x68] sm:$0xff]
    %v1177 = vld [vmem:[#allocation7 + $0x70] sm:$0xff]
    %v1178 = vld [vmem:[#allocation7 + $0x78] sm:$0xff]
    %v1179 = vld [vmem:[#allocation7 + $0x80] sm:$0xff]
    %v1180 = vld [vmem:[#allocation7 + $0x88] sm:$0xff]
    %v1181 = vld [vmem:[#allocation7 + $0x90] sm:$0xff]
    %v1182 = vld [vmem:[#allocation7 + $0x98] sm:$0xff]
    %v1183 = vld [vmem:[#allocation7 + $0xa0] sm:$0xff]
    %v1184 = vld [vmem:[#allocation7 + $0xa8] sm:$0xff]
    %v1185 = vld [vmem:[#allocation7 + $0xb0] sm:$0xff]
    %v1186 = vld [vmem:[#allocation7 + $0xb8] sm:$0xff]
    %v1187 = vld [vmem:[#allocation7 + $0xc0] sm:$0xff]
    %v1188 = vld [vmem:[#allocation7 + $0xc8] sm:$0xff]
    %v1189 = vld [vmem:[#allocation7 + $0xd0] sm:$0xff]
    %v1190 = vld [vmem:[#allocation7 + $0xd8] sm:$0xff]
    %v1191 = vld [vmem:[#allocation7 + $0xe0] sm:$0xff]
    %v1192 = vld [vmem:[#allocation7 + $0xe8] sm:$0xff]
    %v1193 = vld [vmem:[#allocation7 + $0xf0] sm:$0xff]
    %v1194 = vld [vmem:[#allocation7 + $0xf8] sm:$0xff]
    %v1195 = vld [vmem:[#allocation7 + $0x100] sm:$0xff]
    %v1196 = vld [vmem:[#allocation7 + $0x108] sm:$0xff]
    %v1197 = vld [vmem:[#allocation7 + $0x110] sm:$0xff]
    %v1198 = vld [vmem:[#allocation7 + $0x118] sm:$0xff]
    %v1199 = vld [vmem:[#allocation7 + $0x120] sm:$0xff]
    %v1200 = vld [vmem:[#allocation7 + $0x128] sm:$0xff]
    %v1201 = vld [vmem:[#allocation7 + $0x130] sm:$0xff]
    %v1202 = vld [vmem:[#allocation7 + $0x138] sm:$0xff]
    %v1203 = vld [vmem:[#allocation7 + $0x140] sm:$0xff]
    %v1204 = vld [vmem:[#allocation7 + $0x148] sm:$0xff]
    %v1205 = vld [vmem:[#allocation7 + $0x150] sm:$0xff]
    %v1206 = vld [vmem:[#allocation7 + $0x158] sm:$0xff]
    %v1207 = vld [vmem:[#allocation7 + $0x160] sm:$0xff]
    %v1208 = vld [vmem:[#allocation7 + $0x168] sm:$0xff]
    %v1209 = vld [vmem:[#allocation7 + $0x170] sm:$0xff]
    %v1210 = vld [vmem:[#allocation7 + $0x178] sm:$0xff]
    %v1211 = vld [vmem:[#allocation7 + $0x180] sm:$0xff]
    %v1212 = vld [vmem:[#allocation7 + $0x188] sm:$0xff]
    %v1213 = vld [vmem:[#allocation7 + $0x190] sm:$0xff]
    %v1214 = vld [vmem:[#allocation7 + $0x198] sm:$0xff]
    %v1215 = vld [vmem:[#allocation7 + $0x1a0] sm:$0xff]
    %v1216 = vld [vmem:[#allocation7 + $0x1a8] sm:$0xff]
    %v1217 = vld [vmem:[#allocation7 + $0x1b0] sm:$0xff]
    %v1218 = vld [vmem:[#allocation7 + $0x1b8] sm:$0xff]
    %v1219 = vld [vmem:[#allocation7 + $0x1c0] sm:$0xff]
    %v1220 = vld [vmem:[#allocation7 + $0x1c8] sm:$0xff]
    %v1221 = vld [vmem:[#allocation7 + $0x1d0] sm:$0xff]
    %v1222 = vld [vmem:[#allocation7 + $0x1d8] sm:$0xff]
    %v1223 = vld [vmem:[#allocation7 + $0x1e0] sm:$0xff]
    %v1224 = vld [vmem:[#allocation7 + $0x1e8] sm:$0xff]
    %v1225 = vld [vmem:[#allocation7 + $0x1f0] sm:$0xff]
    %v1226 = vld [vmem:[#allocation7 + $0x1f8] sm:$0xff]
    %v1227 = vld [vmem:[#allocation8 + $0x10] sm:$0xff]
    %v1228 = vld [vmem:[#allocation8 + $0x28] sm:$0xff]
    %v1229 = vld [vmem:[#allocation8 + $0x40] sm:$0xff]
    %v1230 = vld [vmem:[#allocation8 + $0x58] sm:$0xff]
    %v1231 = vld [vmem:[#allocation8 + $0x70] sm:$0xff]
    %v1232 = vld [vmem:[#allocation8 + $0x88] sm:$0xff]
    %v1233 = vld [vmem:[#allocation8 + $0xa0] sm:$0xff]
    %v1234 = vld [vmem:[#allocation8 + $0xb8] sm:$0xff]
    %v1235 = vld [vmem:[#allocation8 + $0xd0] sm:$0xff]
    %v1236 = vld [vmem:[#allocation8 + $0xe8] sm:$0xff]
    %v1237 = vld [vmem:[#allocation8 + $0x100] sm:$0xff]
    %v1238 = vld [vmem:[#allocation8 + $0x118] sm:$0xff]
    %v1239 = vld [vmem:[#allocation8 + $0x130] sm:$0xff]
    %v1240 = vld [vmem:[#allocation8 + $0x148] sm:$0xff]
    %v1241 = vld [vmem:[#allocation8 + $0x160] sm:$0xff]
    %v1242 = vld [vmem:[#allocation8 + $0x178] sm:$0xff]
    %v1243 = vld [vmem:[#allocation10 + $0x2] sm:$0x1]
    %v1245 = vlaneseq
    %v1246 = vshrl.u32 %v1245, 7
    %v1247 = vsub.s32 0, %v1246
    %v1248 = vrot.slane %v1243, %v1247
    %1250 = vmatprep.subr.mxu0 0.0
    %1251 = vmatpush1.msra.mxu0 %v1227
    %1252 = vmatprep.subr.mxu0 0.0
    %1253 = vmatpush1.msra.mxu0 %v1228
    %1254 = vmatprep.subr.mxu0 0.0
    %1255 = vmatpush1.msra.mxu0 %v1229
    %1256 = vmatprep.subr.mxu0 0.0
    %1257 = vmatpush1.msra.mxu0 %v1230
    %1258 = vmatprep.subr.mxu0 0.0
    %1259 = vmatpush1.msra.mxu0 %v1231
    %1260 = vmatprep.subr.mxu0 0.0
    %1261 = vmatpush1.msra.mxu0 %v1232
    %1262 = vmatprep.subr.mxu0 0.0
    %1263 = vmatpush1.msra.mxu0 %v1233
    %1264 = vmatprep.subr.mxu0 0.0
    %1265 = vmatpush1.msra.mxu0 %v1234
    %1266 = vmatprep.subr.mxu0 0.0
    %1267 = vmatpush1.msra.mxu0 %v1235
    %1268 = vmatprep.subr.mxu0 0.0
    %1269 = vmatpush1.msra.mxu0 %v1236
    %1270 = vmatprep.subr.mxu0 0.0
    %1271 = vmatpush1.msra.mxu0 %v1237
    %1272 = vmatprep.subr.mxu0 0.0
    %1273 = vmatpush1.msra.mxu0 %v1238
    %1274 = vmatprep.subr.mxu0 0.0
    %1275 = vmatpush1.msra.mxu0 %v1239
    %1276 = vmatprep.subr.mxu0 0.0
    %1277 = vmatpush1.msra.mxu0 %v1240
    %1278 = vmatprep.subr.mxu0 0.0
    %1279 = vmatpush1.msra.mxu0 %v1241
    %1280 = vmatprep.subr.mxu0 0.0
    %1281 = vmatpush1.msra.mxu0 %v1242
    %1282 = vmatprep.subr.mxu0 0.0
    %1283 = vmatpush1.msra.mxu0 0.0
    %1284 = vmatprep.subr.mxu0 0.0
    %1285 = vmatpush1.msra.mxu0 0.0
    %1286 = vmatprep.subr.mxu0 0.0
    %1287 = vmatpush1.msra.mxu0 0.0
    %1288 = vmatprep.subr.mxu0 0.0
    %1289 = vmatpush1.msra.mxu0 0.0
    %1290 = vmatprep.subr.mxu0 0.0
    %1291 = vmatpush1.msra.mxu0 0.0
    %1292 = vmatprep.subr.mxu0 0.0
    %1293 = vmatpush1.msra.mxu0 0.0
    %1294 = vmatprep.subr.mxu0 0.0
    %1295 = vmatpush1.msra.mxu0 0.0
    %1296 = vmatprep.subr.mxu0 0.0
    %1297 = vmatpush1.msra.mxu0 0.0
    %1298 = vmatprep.subr.mxu0 0.0
    %1299 = vmatpush1.msra.mxu0 0.0
    %1300 = vmatprep.subr.mxu0 0.0
    %1301 = vmatpush1.msra.mxu0 0.0
    %1302 = vmatprep.subr.mxu0 0.0
    %1303 = vmatpush1.msra.mxu0 0.0
    %1304 = vmatprep.subr.mxu0 0.0
    %1305 = vmatpush1.msra.mxu0 0.0
    %1306 = vmatprep.subr.mxu0 0.0
    %1307 = vmatpush1.msra.mxu0 0.0
    %1308 = vmatprep.subr.mxu0 0.0
    %1309 = vmatpush1.msra.mxu0 0.0
    %1310 = vmatprep.subr.mxu0 0.0
    %1311 = vmatpush1.msra.mxu0 0.0
    %1312 = vmatprep.subr.mxu0 0.0
    %1313 = vmatpush1.msra.mxu0 0.0
    %1314 = vmatprep.mubr.f32.mxu0 0.0
    %1315 = vmatmul.mubr.f32.gmra.mrb[0].mxu0 %v1163
    %v1316 = vpop.f32.mrb[0].mxu0
    %v1317 = vadd.f32 %v1248, %v1316
    %v1318 = vpop.f32.mrb[0].mxu0
    %1319 = vmatprep.mubr.f32.mxu0 0.0
    %1320 = vmatmul.mubr.f32.gmra.mrb[0].mxu0 %v1164
    %v1321 = vpop.f32.mrb[0].mxu0
    %v1322 = vadd.f32 %v1248, %v1321
    %v1323 = vpop.f32.mrb[0].mxu0
    %1324 = vmatprep.mubr.f32.mxu0 0.0
    %1325 = vmatmul.mubr.f32.gmra.mrb[0].mxu0 %v1165
    %v1326 = vpop.f32.mrb[0].mxu0
    %v1327 = vadd.f32 %v1248, %v1326
    %v1328 = vpop.f32.mrb[0].mxu0
    %1329 = vmatprep.mubr.f32.mxu0 0.0
    %1330 = vmatmul.mubr.f32.gmra.mrb[0].mxu0 %v1166
    %v1331 = vpop.f32.mrb[0].mxu0
    %v1332 = vadd.f32 %v1248, %v1331
    %v1333 = vpop.f32.mrb[0].mxu0
    %1334 = vmatprep.mubr.f32.mxu0 0.0
    %1335 = vmatmul.mubr.f32.gmra.mrb[0].mxu0 %v1167
    %v1336 = vpop.f32.mrb[0].mxu0
    %v1337 = vadd.f32 %v1248, %v1336
    %v1338 = vpop.f32.mrb[0].mxu0
    %1339 = vmatprep.mubr.f32.mxu0 0.0
    %1340 = vmatmul.mubr.f32.gmra.mrb[0].mxu0 %v1168
    %v1341 = vpop.f32.mrb[0].mxu0
    %v1342 = vadd.f32 %v1248, %v1341
    %v1343 = vpop.f32.mrb[0].mxu0
    %1344 = vmatprep.mubr.f32.mxu0 0.0
    %1345 = vmatmul.mubr.f32.gmra.mrb[0].mxu0 %v1169
    %v1346 = vpop.f32.mrb[0].mxu0
    %v1347 = vadd.f32 %v1248, %v1346
    %v1348 = vpop.f32.mrb[0].mxu0
    %1349 = vmatprep.mubr.f32.mxu0 0.0
    %1350 = vmatmul.mubr.f32.gmra.mrb[0].mxu0 %v1170
    %v1351 = vpop.f32.mrb[0].mxu0
    %v1352 = vadd.f32 %v1248, %v1351
    %v1353 = vpop.f32.mrb[0].mxu0
    %1354 = vmatprep.mubr.f32.mxu0 0.0
    %1355 = vmatmul.mubr.f32.gmra.mrb[0].mxu0 %v1171
    %v1356 = vpop.f32.mrb[0].mxu0
    %v1357 = vadd.f32 %v1248, %v1356
    %v1358 = vpop.f32.mrb[0].mxu0
    %1359 = vmatprep.mubr.f32.mxu0 0.0
    %1360 = vmatmul.mubr.f32.gmra.mrb[0].mxu0 %v1172
    %v1361 = vpop.f32.mrb[0].mxu0
    %v1362 = vadd.f32 %v1248, %v1361
    %v1363 = vpop.f32.mrb[0].mxu0
    %1364 = vmatprep.mubr.f32.mxu0 0.0
    %1365 = vmatmul.mubr.f32.gmra.mrb[0].mxu0 %v1173
    %v1366 = vpop.f32.mrb[0].mxu0
    %v1367 = vadd.f32 %v1248, %v1366
    %v1368 = vpop.f32.mrb[0].mxu0
    %1369 = vmatprep.mubr.f32.mxu0 0.0
    %1370 = vmatmul.mubr.f32.gmra.mrb[0].mxu0 %v1174
    %v1371 = vpop.f32.mrb[0].mxu0
    %v1372 = vadd.f32 %v1248, %v1371
    %v1373 = vpop.f32.mrb[0].mxu0
    %1374 = vmatprep.mubr.f32.mxu0 0.0
    %1375 = vmatmul.mubr.f32.gmra.mrb[0].mxu0 %v1175
    %v1376 = vpop.f32.mrb[0].mxu0
    %v1377 = vadd.f32 %v1248, %v1376
    %v1378 = vpop.f32.mrb[0].mxu0
    %1379 = vmatprep.mubr.f32.mxu0 0.0
    %1380 = vmatmul.mubr.f32.gmra.mrb[0].mxu0 %v1176
    %v1381 = vpop.f32.mrb[0].mxu0
    %v1382 = vadd.f32 %v1248, %v1381
    %v1383 = vpop.f32.mrb[0].mxu0
    %1384 = vmatprep.mubr.f32.mxu0 0.0
    %1385 = vmatmul.mubr.f32.gmra.mrb[0].mxu0 %v1177
    %v1386 = vpop.f32.mrb[0].mxu0
    %v1387 = vadd.f32 %v1248, %v1386
    %v1388 = vpop.f32.mrb[0].mxu0
    %1389 = vmatprep.mubr.f32.mxu0 0.0
    %1390 = vmatmul.mubr.f32.gmra.mrb[0].mxu0 %v1178
    %v1391 = vpop.f32.mrb[0].mxu0
    %v1392 = vadd.f32 %v1248, %v1391
    %v1393 = vpop.f32.mrb[0].mxu0
    %1394 = vmatprep.mubr.f32.mxu0 0.0
    %1395 = vmatmul.mubr.f32.gmra.mrb[0].mxu0 %v1179
    %v1396 = vpop.f32.mrb[0].mxu0
    %v1397 = vadd.f32 %v1248, %v1396
    %v1398 = vpop.f32.mrb[0].mxu0
    %1399 = vmatprep.mubr.f32.mxu0 0.0
    %1400 = vmatmul.mubr.f32.gmra.mrb[0].mxu0 %v1180
    %v1401 = vpop.f32.mrb[0].mxu0
    %v1402 = vadd.f32 %v1248, %v1401
    %v1403 = vpop.f32.mrb[0].mxu0
    %1404 = vmatprep.mubr.f32.mxu0 0.0
    %1405 = vmatmul.mubr.f32.gmra.mrb[0].mxu0 %v1181
    %v1406 = vpop.f32.mrb[0].mxu0
    %v1407 = vadd.f32 %v1248, %v1406
    %v1408 = vpop.f32.mrb[0].mxu0
    %1409 = vmatprep.mubr.f32.mxu0 0.0
    %1410 = vmatmul.mubr.f32.gmra.mrb[0].mxu0 %v1182
    %v1411 = vpop.f32.mrb[0].mxu0
    %v1412 = vadd.f32 %v1248, %v1411
    %v1413 = vpop.f32.mrb[0].mxu0
    %1414 = vmatprep.mubr.f32.mxu0 0.0
    %1415 = vmatmul.mubr.f32.gmra.mrb[0].mxu0 %v1183
    %v1416 = vpop.f32.mrb[0].mxu0
    %v1417 = vadd.f32 %v1248, %v1416
    %v1418 = vpop.f32.mrb[0].mxu0
    %1419 = vmatprep.mubr.f32.mxu0 0.0
    %1420 = vmatmul.mubr.f32.gmra.mrb[0].mxu0 %v1184
    %v1421 = vpop.f32.mrb[0].mxu0
    %v1422 = vadd.f32 %v1248, %v1421
    %v1423 = vpop.f32.mrb[0].mxu0
    %1424 = vmatprep.mubr.f32.mxu0 0.0
    %1425 = vmatmul.mubr.f32.gmra.mrb[0].mxu0 %v1185
    %v1426 = vpop.f32.mrb[0].mxu0
    %v1427 = vadd.f32 %v1248, %v1426
    %v1428 = vpop.f32.mrb[0].mxu0
    %1429 = vmatprep.mubr.f32.mxu0 0.0
    %1430 = vmatmul.mubr.f32.gmra.mrb[0].mxu0 %v1186
    %v1431 = vpop.f32.mrb[0].mxu0
    %v1432 = vadd.f32 %v1248, %v1431
    %v1433 = vpop.f32.mrb[0].mxu0
    %1434 = vmatprep.mubr.f32.mxu0 0.0
    %1435 = vmatmul.mubr.f32.gmra.mrb[0].mxu0 %v1187
    %v1436 = vpop.f32.mrb[0].mxu0
    %v1437 = vadd.f32 %v1248, %v1436
    %v1438 = vpop.f32.mrb[0].mxu0
    %1439 = vmatprep.mubr.f32.mxu0 0.0
    %1440 = vmatmul.mubr.f32.gmra.mrb[0].mxu0 %v1188
    %v1441 = vpop.f32.mrb[0].mxu0
    %v1442 = vadd.f32 %v1248, %v1441
    %v1443 = vpop.f32.mrb[0].mxu0
    %1444 = vmatprep.mubr.f32.mxu0 0.0
    %1445 = vmatmul.mubr.f32.gmra.mrb[0].mxu0 %v1189
    %v1446 = vpop.f32.mrb[0].mxu0
    %v1447 = vadd.f32 %v1248, %v1446
    %v1448 = vpop.f32.mrb[0].mxu0
    %1449 = vmatprep.mubr.f32.mxu0 0.0
    %1450 = vmatmul.mubr.f32.gmra.mrb[0].mxu0 %v1190
    %v1451 = vpop.f32.mrb[0].mxu0
    %v1452 = vadd.f32 %v1248, %v1451
    %v1453 = vpop.f32.mrb[0].mxu0
    %1454 = vmatprep.mubr.f32.mxu0 0.0
    %1455 = vmatmul.mubr.f32.gmra.mrb[0].mxu0 %v1191
    %v1456 = vpop.f32.mrb[0].mxu0
    %v1457 = vadd.f32 %v1248, %v1456
    %v1458 = vpop.f32.mrb[0].mxu0
    %1459 = vmatprep.mubr.f32.mxu0 0.0
    %1460 = vmatmul.mubr.f32.gmra.mrb[0].mxu0 %v1192
    %v1461 = vpop.f32.mrb[0].mxu0
    %v1462 = vadd.f32 %v1248, %v1461
    %v1463 = vpop.f32.mrb[0].mxu0
    %1464 = vmatprep.mubr.f32.mxu0 0.0
    %1465 = vmatmul.mubr.f32.gmra.mrb[0].mxu0 %v1193
    %v1466 = vpop.f32.mrb[0].mxu0
    %v1467 = vadd.f32 %v1248, %v1466
    %v1468 = vpop.f32.mrb[0].mxu0
    %1469 = vmatprep.mubr.f32.mxu0 0.0
    %1470 = vmatmul.mubr.f32.gmra.mrb[0].mxu0 %v1194
    %v1471 = vpop.f32.mrb[0].mxu0
    %v1472 = vadd.f32 %v1248, %v1471
    %v1473 = vpop.f32.mrb[0].mxu0
    %1474 = vmatprep.mubr.f32.mxu0 0.0
    %1475 = vmatmul.mubr.f32.gmra.mrb[0].mxu0 %v1195
    %v1476 = vpop.f32.mrb[0].mxu0
    %v1477 = vadd.f32 %v1248, %v1476
    %v1478 = vpop.f32.mrb[0].mxu0
    %1479 = vmatprep.mubr.f32.mxu0 0.0
    %1480 = vmatmul.mubr.f32.gmra.mrb[0].mxu0 %v1196
    %v1481 = vpop.f32.mrb[0].mxu0
    %v1482 = vadd.f32 %v1248, %v1481
    %v1483 = vpop.f32.mrb[0].mxu0
    %1484 = vmatprep.mubr.f32.mxu0 0.0
    %1485 = vmatmul.mubr.f32.gmra.mrb[0].mxu0 %v1197
    %v1486 = vpop.f32.mrb[0].mxu0
    %v1487 = vadd.f32 %v1248, %v1486
    %v1488 = vpop.f32.mrb[0].mxu0
    %1489 = vmatprep.mubr.f32.mxu0 0.0
    %1490 = vmatmul.mubr.f32.gmra.mrb[0].mxu0 %v1198
    %v1491 = vpop.f32.mrb[0].mxu0
    %v1492 = vadd.f32 %v1248, %v1491
    %v1493 = vpop.f32.mrb[0].mxu0
    %1494 = vmatprep.mubr.f32.mxu0 0.0
    %1495 = vmatmul.mubr.f32.gmra.mrb[0].mxu0 %v1199
    %v1496 = vpop.f32.mrb[0].mxu0
    %v1497 = vadd.f32 %v1248, %v1496
    %v1498 = vpop.f32.mrb[0].mxu0
    %1499 = vmatprep.mubr.f32.mxu0 0.0
    %1500 = vmatmul.mubr.f32.gmra.mrb[0].mxu0 %v1200
    %v1501 = vpop.f32.mrb[0].mxu0
    %v1502 = vadd.f32 %v1248, %v1501
    %v1503 = vpop.f32.mrb[0].mxu0
    %1504 = vmatprep.mubr.f32.mxu0 0.0
    %1505 = vmatmul.mubr.f32.gmra.mrb[0].mxu0 %v1201
    %v1506 = vpop.f32.mrb[0].mxu0
    %v1507 = vadd.f32 %v1248, %v1506
    %v1508 = vpop.f32.mrb[0].mxu0
    %1509 = vmatprep.mubr.f32.mxu0 0.0
    %1510 = vmatmul.mubr.f32.gmra.mrb[0].mxu0 %v1202
    %v1511 = vpop.f32.mrb[0].mxu0
    %v1512 = vadd.f32 %v1248, %v1511
    %v1513 = vpop.f32.mrb[0].mxu0
    %1514 = vmatprep.mubr.f32.mxu0 0.0
    %1515 = vmatmul.mubr.f32.gmra.mrb[0].mxu0 %v1203
    %v1516 = vpop.f32.mrb[0].mxu0
    %v1517 = vadd.f32 %v1248, %v1516
    %v1518 = vpop.f32.mrb[0].mxu0
    %1519 = vmatprep.mubr.f32.mxu0 0.0
    %1520 = vmatmul.mubr.f32.gmra.mrb[0].mxu0 %v1204
    %v1521 = vpop.f32.mrb[0].mxu0
    %v1522 = vadd.f32 %v1248, %v1521
    %v1523 = vpop.f32.mrb[0].mxu0
    %1524 = vmatprep.mubr.f32.mxu0 0.0
    %1525 = vmatmul.mubr.f32.gmra.mrb[0].mxu0 %v1205
    %v1526 = vpop.f32.mrb[0].mxu0
    %v1527 = vadd.f32 %v1248, %v1526
    %v1528 = vpop.f32.mrb[0].mxu0
    %1529 = vmatprep.mubr.f32.mxu0 0.0
    %1530 = vmatmul.mubr.f32.gmra.mrb[0].mxu0 %v1206
    %v1531 = vpop.f32.mrb[0].mxu0
    %v1532 = vadd.f32 %v1248, %v1531
    %v1533 = vpop.f32.mrb[0].mxu0
    %1534 = vmatprep.mubr.f32.mxu0 0.0
    %1535 = vmatmul.mubr.f32.gmra.mrb[0].mxu0 %v1207
    %v1536 = vpop.f32.mrb[0].mxu0
    %v1537 = vadd.f32 %v1248, %v1536
    %v1538 = vpop.f32.mrb[0].mxu0
    %1539 = vmatprep.mubr.f32.mxu0 0.0
    %1540 = vmatmul.mubr.f32.gmra.mrb[0].mxu0 %v1208
    %v1541 = vpop.f32.mrb[0].mxu0
    %v1542 = vadd.f32 %v1248, %v1541
    %v1543 = vpop.f32.mrb[0].mxu0
    %1544 = vmatprep.mubr.f32.mxu0 0.0
    %1545 = vmatmul.mubr.f32.gmra.mrb[0].mxu0 %v1209
    %v1546 = vpop.f32.mrb[0].mxu0
    %v1547 = vadd.f32 %v1248, %v1546
    %v1548 = vpop.f32.mrb[0].mxu0
    %1549 = vmatprep.mubr.f32.mxu0 0.0
    %1550 = vmatmul.mubr.f32.gmra.mrb[0].mxu0 %v1210
    %v1551 = vpop.f32.mrb[0].mxu0
    %v1552 = vadd.f32 %v1248, %v1551
    %v1553 = vpop.f32.mrb[0].mxu0
    %1554 = vmatprep.mubr.f32.mxu0 0.0
    %1555 = vmatmul.mubr.f32.gmra.mrb[0].mxu0 %v1211
    %v1556 = vpop.f32.mrb[0].mxu0
    %v1557 = vadd.f32 %v1248, %v1556
    %v1558 = vpop.f32.mrb[0].mxu0
    %1559 = vmatprep.mubr.f32.mxu0 0.0
    %1560 = vmatmul.mubr.f32.gmra.mrb[0].mxu0 %v1212
    %v1561 = vpop.f32.mrb[0].mxu0
    %v1562 = vadd.f32 %v1248, %v1561
    %v1563 = vpop.f32.mrb[0].mxu0
    %1564 = vmatprep.mubr.f32.mxu0 0.0
    %1565 = vmatmul.mubr.f32.gmra.mrb[0].mxu0 %v1213
    %v1566 = vpop.f32.mrb[0].mxu0
    %v1567 = vadd.f32 %v1248, %v1566
    %v1568 = vpop.f32.mrb[0].mxu0
    %1569 = vmatprep.mubr.f32.mxu0 0.0
    %1570 = vmatmul.mubr.f32.gmra.mrb[0].mxu0 %v1214
    %v1571 = vpop.f32.mrb[0].mxu0
    %v1572 = vadd.f32 %v1248, %v1571
    %v1573 = vpop.f32.mrb[0].mxu0
    %1574 = vmatprep.mubr.f32.mxu0 0.0
    %1575 = vmatmul.mubr.f32.gmra.mrb[0].mxu0 %v1215
    %v1576 = vpop.f32.mrb[0].mxu0
    %v1577 = vadd.f32 %v1248, %v1576
    %v1578 = vpop.f32.mrb[0].mxu0
    %1579 = vmatprep.mubr.f32.mxu0 0.0
    %1580 = vmatmul.mubr.f32.gmra.mrb[0].mxu0 %v1216
    %v1581 = vpop.f32.mrb[0].mxu0
    %v1582 = vadd.f32 %v1248, %v1581
    %v1583 = vpop.f32.mrb[0].mxu0
    %1584 = vmatprep.mubr.f32.mxu0 0.0
    %1585 = vmatmul.mubr.f32.gmra.mrb[0].mxu0 %v1217
    %v1586 = vpop.f32.mrb[0].mxu0
    %v1587 = vadd.f32 %v1248, %v1586
    %v1588 = vpop.f32.mrb[0].mxu0
    %1589 = vmatprep.mubr.f32.mxu0 0.0
    %1590 = vmatmul.mubr.f32.gmra.mrb[0].mxu0 %v1218
    %v1591 = vpop.f32.mrb[0].mxu0
    %v1592 = vadd.f32 %v1248, %v1591
    %v1593 = vpop.f32.mrb[0].mxu0
    %1594 = vmatprep.mubr.f32.mxu0 0.0
    %1595 = vmatmul.mubr.f32.gmra.mrb[0].mxu0 %v1219
    %v1596 = vpop.f32.mrb[0].mxu0
    %v1597 = vadd.f32 %v1248, %v1596
    %v1598 = vpop.f32.mrb[0].mxu0
    %1599 = vmatprep.mubr.f32.mxu0 0.0
    %1600 = vmatmul.mubr.f32.gmra.mrb[0].mxu0 %v1220
    %v1601 = vpop.f32.mrb[0].mxu0
    %v1602 = vadd.f32 %v1248, %v1601
    %v1603 = vpop.f32.mrb[0].mxu0
    %1604 = vmatprep.mubr.f32.mxu0 0.0
    %1605 = vmatmul.mubr.f32.gmra.mrb[0].mxu0 %v1221
    %v1606 = vpop.f32.mrb[0].mxu0
    %v1607 = vadd.f32 %v1248, %v1606
    %v1608 = vpop.f32.mrb[0].mxu0
    %1609 = vmatprep.mubr.f32.mxu0 0.0
    %1610 = vmatmul.mubr.f32.gmra.mrb[0].mxu0 %v1222
    %v1611 = vpop.f32.mrb[0].mxu0
    %v1612 = vadd.f32 %v1248, %v1611
    %v1613 = vpop.f32.mrb[0].mxu0
    %1614 = vmatprep.mubr.f32.mxu0 0.0
    %1615 = vmatmul.mubr.f32.gmra.mrb[0].mxu0 %v1223
    %v1616 = vpop.f32.mrb[0].mxu0
    %v1617 = vadd.f32 %v1248, %v1616
    %v1618 = vpop.f32.mrb[0].mxu0
    %1619 = vmatprep.mubr.f32.mxu0 0.0
    %1620 = vmatmul.mubr.f32.gmra.mrb[0].mxu0 %v1224
    %v1621 = vpop.f32.mrb[0].mxu0
    %v1622 = vadd.f32 %v1248, %v1621
    %v1623 = vpop.f32.mrb[0].mxu0
    %1624 = vmatprep.mubr.f32.mxu0 0.0
    %1625 = vmatmul.mubr.f32.gmra.mrb[0].mxu0 %v1225
    %v1626 = vpop.f32.mrb[0].mxu0
    %v1627 = vadd.f32 %v1248, %v1626
    %v1628 = vpop.f32.mrb[0].mxu0
    %1629 = vmatprep.mubr.f32.mxu0 0.0
    %1630 = vmatmul.mubr.f32.gmra.mrb[0].mxu0 %v1226
    %v1631 = vpop.f32.mrb[0].mxu0
    %v1632 = vadd.f32 %v1248, %v1631
    %v1633 = vpop.f32.mrb[0].mxu0
    %1634 = vdwg.mxu0
    %1635 = vst [vmem:[#allocation14] sm:$0xff] %v1317
    %1636 = vst [vmem:[#allocation14 + $0x8] sm:$0xff] %v1322
    %1637 = vst [vmem:[#allocation14 + $0x10] sm:$0xff] %v1327
    %1638 = vst [vmem:[#allocation14 + $0x18] sm:$0xff] %v1332
    %1639 = vst [vmem:[#allocation14 + $0x20] sm:$0xff] %v1337
    %1640 = vst [vmem:[#allocation14 + $0x28] sm:$0xff] %v1342
    %1641 = vst [vmem:[#allocation14 + $0x30] sm:$0xff] %v1347
    %1642 = vst [vmem:[#allocation14 + $0x38] sm:$0xff] %v1352
    %1643 = vst [vmem:[#allocation14 + $0x40] sm:$0xff] %v1357
    %1644 = vst [vmem:[#allocation14 + $0x48] sm:$0xff] %v1362
    %1645 = vst [vmem:[#allocation14 + $0x50] sm:$0xff] %v1367
    %1646 = vst [vmem:[#allocation14 + $0x58] sm:$0xff] %v1372
    %1647 = vst [vmem:[#allocation14 + $0x60] sm:$0xff] %v1377
    %1648 = vst [vmem:[#allocation14 + $0x68] sm:$0xff] %v1382
    %1649 = vst [vmem:[#allocation14 + $0x70] sm:$0xff] %v1387
    %1650 = vst [vmem:[#allocation14 + $0x78] sm:$0xff] %v1392
    %1651 = vst [vmem:[#allocation14 + $0x80] sm:$0xff] %v1397
    %1652 = vst [vmem:[#allocation14 + $0x88] sm:$0xff] %v1402
    %1653 = vst [vmem:[#allocation14 + $0x90] sm:$0xff] %v1407
    %1654 = vst [vmem:[#allocation14 + $0x98] sm:$0xff] %v1412
    %1655 = vst [vmem:[#allocation14 + $0xa0] sm:$0xff] %v1417
    %1656 = vst [vmem:[#allocation14 + $0xa8] sm:$0xff] %v1422
    %1657 = vst [vmem:[#allocation14 + $0xb0] sm:$0xff] %v1427
    %1658 = vst [vmem:[#allocation14 + $0xb8] sm:$0xff] %v1432
    %1659 = vst [vmem:[#allocation14 + $0xc0] sm:$0xff] %v1437
    %1660 = vst [vmem:[#allocation14 + $0xc8] sm:$0xff] %v1442
    %1661 = vst [vmem:[#allocation14 + $0xd0] sm:$0xff] %v1447
    %1662 = vst [vmem:[#allocation14 + $0xd8] sm:$0xff] %v1452
    %1663 = vst [vmem:[#allocation14 + $0xe0] sm:$0xff] %v1457
    %1664 = vst [vmem:[#allocation14 + $0xe8] sm:$0xff] %v1462
    %1665 = vst [vmem:[#allocation14 + $0xf0] sm:$0xff] %v1467
    %1666 = vst [vmem:[#allocation14 + $0xf8] sm:$0xff] %v1472
    %1667 = vst [vmem:[#allocation14 + $0x100] sm:$0xff] %v1477
    %1668 = vst [vmem:[#allocation14 + $0x108] sm:$0xff] %v1482
    %1669 = vst [vmem:[#allocation14 + $0x110] sm:$0xff] %v1487
    %1670 = vst [vmem:[#allocation14 + $0x118] sm:$0xff] %v1492
    %1671 = vst [vmem:[#allocation14 + $0x120] sm:$0xff] %v1497
    %1672 = vst [vmem:[#allocation14 + $0x128] sm:$0xff] %v1502
    %1673 = vst [vmem:[#allocation14 + $0x130] sm:$0xff] %v1507
    %1674 = vst [vmem:[#allocation14 + $0x138] sm:$0xff] %v1512
    %1675 = vst [vmem:[#allocation14 + $0x140] sm:$0xff] %v1517
    %1676 = vst [vmem:[#allocation14 + $0x148] sm:$0xff] %v1522
    %1677 = vst [vmem:[#allocation14 + $0x150] sm:$0xff] %v1527
    %1678 = vst [vmem:[#allocation14 + $0x158] sm:$0xff] %v1532
    %1679 = vst [vmem:[#allocation14 + $0x160] sm:$0xff] %v1537
    %1680 = vst [vmem:[#allocation14 + $0x168] sm:$0xff] %v1542
    %1681 = vst [vmem:[#allocation14 + $0x170] sm:$0xff] %v1547
    %1682 = vst [vmem:[#allocation14 + $0x178] sm:$0xff] %v1552
    %1683 = vst [vmem:[#allocation14 + $0x180] sm:$0xff] %v1557
    %1684 = vst [vmem:[#allocation14 + $0x188] sm:$0xff] %v1562
    %1685 = vst [vmem:[#allocation14 + $0x190] sm:$0xff] %v1567
    %1686 = vst [vmem:[#allocation14 + $0x198] sm:$0xff] %v1572
    %1687 = vst [vmem:[#allocation14 + $0x1a0] sm:$0xff] %v1577
    %1688 = vst [vmem:[#allocation14 + $0x1a8] sm:$0xff] %v1582
    %1689 = vst [vmem:[#allocation14 + $0x1b0] sm:$0xff] %v1587
    %1690 = vst [vmem:[#allocation14 + $0x1b8] sm:$0xff] %v1592
    %1691 = vst [vmem:[#allocation14 + $0x1c0] sm:$0xff] %v1597
    %1692 = vst [vmem:[#allocation14 + $0x1c8] sm:$0xff] %v1602
    %1693 = vst [vmem:[#allocation14 + $0x1d0] sm:$0xff] %v1607
    %1694 = vst [vmem:[#allocation14 + $0x1d8] sm:$0xff] %v1612
    %1695 = vst [vmem:[#allocation14 + $0x1e0] sm:$0xff] %v1617
    %1696 = vst [vmem:[#allocation14 + $0x1e8] sm:$0xff] %v1622
    %1697 = vst [vmem:[#allocation14 + $0x1f0] sm:$0xff] %v1627
    %1698 = vst [vmem:[#allocation14 + $0x1f8] sm:$0xff] %v1632
    // Predicated region
    $region42: #{tpu_custom_call.1} parent=1 // pred_check
      _
    $region43: #{tpu_custom_call.1} parent=1 // pred_check_branch
      %1700 = sbr.rel (0) target = $region45
    $region44: #{tpu_custom_call.1} parent=1 // pred_region
      %s1702 = ssub.s32 8192, 8192
      %1703 = vsyncadd [#allocation4], %s1702
      %s1704 = sshll.u32 [#allocation11], 4
      %s1705 = int_to_ptr.vmem [resolvable:$true] %s1704
      %1710 = dma.vmem_to_hbm [thread:$0]  %s1705, 8192, %s5, [#allocation4], 128, 128, 8
    $region45: #{tpu_custom_call.1} parent=1 // pred_fallthru
      _
    // Predicated region
    $region46: #{tpu_custom_call.1} parent=1 // pred_check
      _
    $region47: #{tpu_custom_call.1} parent=1 // pred_check_branch
      %1712 = sbr.rel (0) target = $region49
    $region48: #{tpu_custom_call.1} parent=1 // pred_region
      %s1714 = ssub.s32 8192, 8192
      %1715 = vsyncadd [#allocation13], %s1714
      %s1716 = sshll.u32 [#allocation12], 4
      %s1717 = int_to_ptr.vmem [resolvable:$true] %s1716
      %1722 = dma.vmem_to_hbm [thread:$0]  %s1717, 8192, %s6, [#allocation13], 128, 128, 8
    $region49: #{tpu_custom_call.1} parent=1 // pred_fallthru
      _
    // Predicated region
    $region50: #{tpu_custom_call.1} parent=1 // pred_check
      _
    $region51: #{tpu_custom_call.1} parent=1 // pred_check_branch
      %1724 = sbr.rel (0) target = $region53
    $region52: #{tpu_custom_call.1} parent=1 // pred_region
      %s1726 = ssub.s32 8192, 8192
      %1727 = vsyncadd [#allocation13], %s1726
      %s1728 = sshll.u32 [#allocation14], 4
      %s1729 = int_to_ptr.vmem [resolvable:$true] %s1728
      %1734 = dma.vmem_to_hbm [thread:$0]  %s1729, 8192, %s7, [#allocation13], 128, 128, 8
    $region53: #{tpu_custom_call.1} parent=1 // pred_fallthru
      _
    // Predicated region
    $region54: #{tpu_custom_call.1} parent=1 // pred_check
      _
    $region55: #{tpu_custom_call.1} parent=1 // pred_check_branch
      %1736 = sbr.rel (0) target = $region57
    $region56: #{tpu_custom_call.1} parent=1 // pred_region
      %1737 = dma.done [#allocation4], 8192
    $region57: #{tpu_custom_call.1} parent=1 // pred_fallthru
      _
    // Predicated region
    $region58: #{tpu_custom_call.1} parent=1 // pred_check
      _
    $region59: #{tpu_custom_call.1} parent=1 // pred_check_branch
      %1739 = sbr.rel (0) target = $region61
    $region60: #{tpu_custom_call.1} parent=1 // pred_region
      %1740 = dma.done [#allocation13], 8192
    $region61: #{tpu_custom_call.1} parent=1 // pred_fallthru
      _
    // Predicated region
    $region62: #{tpu_custom_call.1} parent=1 // pred_check
      _
    $region63: #{tpu_custom_call.1} parent=1 // pred_check_branch
      %1742 = sbr.rel (0) target = $region65
    $region64: #{tpu_custom_call.1} parent=1 // pred_region
      %1743 = dma.done [#allocation13], 8192
    $region65: #{tpu_custom_call.1} parent=1 // pred_fallthru
      _
    %1744 = vsyncpa [#allocation3], 1
    %1745 = vsyncpa [#allocation6], 1
    %1746 = vsyncpa [#allocation9], 1
    %1747 = vsyncpa [#allocation4], 1
    %1748 = vsyncpa [#allocation13], 1

</llo_original>
